<compile_context>
chip_gen: v5e
topology: v5e:2x2
jax: 0.10.0
libtpu: 0.0.40
codegen_flags: <defaults>
</compile_context>

<pallas_src>
import functools
import math

import jax
import jax.numpy as jnp
import numpy as np
from jax import lax
from jax.experimental import pallas as pl
from jax.experimental.pallas import tpu as pltpu

CRAZY_NEGATIVE_VALUE = -5000.0
B_AVG = (19 + 9) / 2.0  # GlobalPool.b_avg


# -----------------------------------------------------------------------------
# Kernel builder (H, W, batch-block and channel count are closed over).
# -----------------------------------------------------------------------------
def _build_kernel(H, W, BB, C):
    HW = H * W
    Mb = BB * HW

    def shift_lanes(y, off):
        # g[:, p] = y[:, p + off] for 0 <= p + off < Mb, else 0 (zero padding).
        if off == 0:
            return y
        pad = jnp.zeros((y.shape[0], abs(off)), dtype=y.dtype)
        if off > 0:
            return jnp.concatenate([y[:, off:], pad], axis=1)
        return jnp.concatenate([pad, y[:, :off]], axis=1)

    def conv3x3(y, w_ref, bmask_ref, patch_ref):
        # im2col: 9 lane-shifted, boundary-masked taps written as bf16 rows of
        # the (9C, Mb) VMEM scratch, then ONE MXU matmul with K = 9C.
        for k in range(9):
            off = (k // 3 - 1) * W + (k % 3 - 1)
            tap = shift_lanes(y, off) * bmask_ref[k]          # f32 (v5e-safe)
            patch_ref[k * C:(k + 1) * C, :] = tap.astype(jnp.bfloat16)
        return jnp.dot(w_ref[...], patch_ref[...],
                       preferred_element_type=jnp.float32)     # (C, Mb) f32

    def bn_act(y, st_ref, m, relu):
        # eval-mode BN folded to y*s + t; single mask multiply (mask is 0/1).
        s = st_ref[:, 0:1]
        t = st_ref[:, 1:2]
        y = (y * s + t) * m
        return jnp.maximum(y, 0.0) if relu else y

    def kernel(x_ref, m_ref, segp_ref, segb_ref, bmask_ref,
               w1_ref, st1_ref, w2_ref, st2_ref,
               wsq_ref, bsq_ref, wex_ref, bex_ref,
               out_ref, patch_ref):
        x = x_ref[...]                       # (C, Mb) f32
        m = m_ref[...]                       # (1, Mb) f32

        # conv1: 3x3, BN (no gamma), relu; conv2: 3x3, BN (gamma), identity
        h = bn_act(conv3x3(x, w1_ref, bmask_ref, patch_ref), st1_ref, m, True)
        h = bn_act(conv3x3(h, w2_ref, bmask_ref, patch_ref), st2_ref, m, False)

        # ---- Squeeze-and-Excitation (masked global pooling per batch) ----
        # mean & scaled mean: one MXU matmul vs precomputed (Mb, 2BB) segments
        # (1/mask_sum and bsc/mask_sum already folded into the entries).
        mean_pack = jnp.dot(h, segp_ref[0],
                            preferred_element_type=jnp.float32)   # (C, 2BB)
        # masked max: pad once, reduce static HW-wide segments.
        h_pad = h + (1.0 - m) * CRAZY_NEGATIVE_VALUE
        mx = jnp.concatenate(
            [jnp.max(h_pad[:, b * HW:(b + 1) * HW], axis=1, keepdims=True)
             for b in range(BB)], axis=1)                          # (C, BB)
        pooled = jnp.concatenate(
            [mean_pack[:, :BB], mean_pack[:, BB:], mx], axis=0)    # (3C, BB)

        hid = jnp.maximum(
            jnp.dot(wsq_ref[...], pooled,
                    preferred_element_type=jnp.float32) + bsq_ref[...], 0.0)
        e = jnp.dot(wex_ref[...], hid,
                    preferred_element_type=jnp.float32) + bex_ref[...]  # (2C, BB)
        sig = 1.0 / (1.0 + jnp.exp(-e[:C, :]))                     # (C, BB)
        gate = jnp.concatenate([sig, e[C:, :]], axis=0)            # (2C, BB)

        # broadcast gate/bias back to every lane: one MXU matmul vs 0/1 segs
        gate_full = jnp.dot(gate, segb_ref[...],
                            preferred_element_type=jnp.float32)    # (2C, Mb)
        h = (gate_full[:C, :] * h + gate_full[C:, :]) * m

        # residual + final relu, lane-dense full-width store
        out_ref[...] = jnp.maximum(h + x, 0.0)

    return kernel


# -----------------------------------------------------------------------------
# Host-side constants / wrapper.
# -----------------------------------------------------------------------------
@functools.lru_cache(maxsize=None)
def _block_constants(H, W, BB):
    """Per-(H, W, BB) constants: 3x3 tap-validity masks (9, 1, Mb) and the 0/1
    batch-segment matrix (BB, Mb). Periodic in HW -> one copy serves every
    grid step."""
    HW = H * W
    M = BB * HW
    p = np.arange(M)
    i = (p % HW) // W
    j = p % W
    bm = np.zeros((9, 1, M), np.float32)
    for k in range(9):
        di, dj = k // 3 - 1, k % 3 - 1
        valid = (i + di >= 0) & (i + di < H) & (j + dj >= 0) & (j + dj < W)
        bm[k, 0, :] = valid.astype(np.float32)
    seg = np.zeros((BB, M), np.float32)
    for b in range(BB):
        seg[b, b * HW:(b + 1) * HW] = 1.0
    return jnp.asarray(bm), jnp.asarray(seg)


def _pick_block_batch(B, HW):
    """Batch elements per grid step: lane-dense blocks with Mb <= 2048 (largest
    that fits), >= 2 grid steps when possible (v7x megacore), and Mb a multiple
    of 256 preferred (v6e/v7x 256-wide MXU)."""
    best = None
    for bb in range(1, B + 1):
        if B % bb:
            continue
        mb = bb * HW
        if mb % 128:
            continue
        steps = B // bb
        score = (mb <= 2048, steps >= 2, mb % 256 == 0,
                 mb if mb <= 2048 else -mb)
        if best is None or score > best[1]:
            best = (bb, score)
    # fallback: single full-width block (masked stores, but always correct)
    return B if best is None else best[0]


def residual_block_forward(x_nchw, mask_buffers, params):
    mask_nchw, mask_sum_hw, mask_sum_hw_sqrt = mask_buffers
    B, C, H, W = x_nchw.shape
    HW = H * W
    BB = _pick_block_batch(B, HW)
    Mb = BB * HW
    G = B // BB
    SE = params['w_sq'].shape[1]

    # channel-major, spatially flattened layout (positions on the lane axis)
    x2 = jnp.transpose(x_nchw, (1, 0, 2, 3)).reshape(C, B * HW).astype(jnp.float32)
    m2 = jnp.transpose(mask_nchw, (1, 0, 2, 3)).reshape(1, B * HW).astype(jnp.float32)

    bmask, seg01 = _block_constants(H, W, BB)

    # pooling segment matrix with 1/mask_sum (and the GlobalPool b_diff scale)
    # folded into the nonzero entries: (G, Mb, 2*BB), one (1, Mb, 2*BB) block
    # per grid step.  NOTE: an all-zero per-batch mask yields inf, exactly as
    # in the reference module.
    inv = (1.0 / mask_sum_hw.reshape(-1)).astype(jnp.float32)                  # (B,)
    bsc = ((mask_sum_hw_sqrt.reshape(-1) - B_AVG) / 10.0).astype(jnp.float32)  # (B,)
    seg_t = seg01.T                                                            # (Mb, BB)
    seg_mean = seg_t[None, :, :] * inv.reshape(G, 1, BB)
    seg_msc = seg_t[None, :, :] * (inv * bsc).reshape(G, 1, BB)
    seg_pool = jnp.concatenate([seg_mean, seg_msc], axis=2)                    # (G, Mb, 2BB)

    def conv_mat(w_hwio):  # (3,3,Cin,Cout) -> (Cout, 9*Cin), tap-major / cin-minor
        return jnp.transpose(w_hwio.reshape(9, C, C),
                             (2, 0, 1)).reshape(C, 9 * C).astype(jnp.bfloat16)

    w1 = conv_mat(params['w1'])
    w2 = conv_mat(params['w2'])
    st1 = params['st1'].astype(jnp.float32)          # (C, 2) [scale, shift]
    st2 = params['st2'].astype(jnp.float32)
    wsq = params['w_sq'].T.astype(jnp.float32)       # (SE, 3C)
    bsq = params['b_sq'].reshape(SE, 1).astype(jnp.float32)
    wex = params['w_ex'].T.astype(jnp.float32)       # (2C, SE)
    bex = params['b_ex'].reshape(2 * C, 1).astype(jnp.float32)

    def const_spec(a):
        nd = a.ndim
        return pl.BlockSpec(a.shape, lambda g, _nd=nd: (0,) * _nd)

    kernel = _build_kernel(H, W, BB, C)

    out = pl.pallas_call(
        kernel,
        out_shape=jax.ShapeDtypeStruct((C, B * HW), jnp.float32),
        grid=(G,),
        in_specs=[
            pl.BlockSpec((C, Mb), lambda g: (0, g)),             # x
            pl.BlockSpec((1, Mb), lambda g: (0, g)),             # mask
            pl.BlockSpec((1, Mb, 2 * BB), lambda g: (g, 0, 0)),  # pooling segments
            const_spec(seg01),                                   # 0/1 broadcast segments
            const_spec(bmask),                                   # 3x3 boundary masks
            const_spec(w1), const_spec(st1),
            const_spec(w2), const_spec(st2),
            const_spec(wsq), const_spec(bsq),
            const_spec(wex), const_spec(bex),
        ],
        out_specs=pl.BlockSpec((C, Mb), lambda g: (0, g)),
        scratch_shapes=[pltpu.VMEM((9 * C, Mb), jnp.bfloat16)],  # im2col patches
        compiler_params=pltpu.CompilerParams(
            dimension_semantics=("parallel",),
            vmem_limit_bytes=32 * 1024 * 1024),
    )(x2, m2, seg_pool, seg01, bmask, w1, st1, w2, st2, wsq, bsq, wex, bex)

    return jnp.transpose(out.reshape(C, B, H, W), (1, 0, 2, 3))


# -----------------------------------------------------------------------------
# Deterministic synthetic parameters (shapes match the PyTorch ResidualBlock).
# -----------------------------------------------------------------------------
def init_params(key, C, SE):
    gain_relu = math.sqrt(2.0)
    ks = jax.random.split(key, 8)

    def xavier(k, shape, fan_in, fan_out, gain):
        std = gain * math.sqrt(2.0 / (fan_in + fan_out))
        return (std * jax.random.normal(k, shape)).astype(jnp.float32)

    def bn_fold(k, n, use_gamma):
        k1, k2, k3, k4 = jax.random.split(k, 4)
        running_mean = 0.1 * jax.random.normal(k1, (n,))
        running_var = 1.0 + 0.2 * jax.random.uniform(k2, (n,))
        beta = 0.1 * jax.random.normal(k3, (n,))
        gamma = (1.0 + 0.1 * jax.random.normal(k4, (n,))
                 if use_gamma else jnp.ones((n,)))
        eps = 1e-5
        s = gamma / jnp.sqrt(running_var + eps)
        t = beta - running_mean * s
        return jnp.stack([s, t], axis=1).astype(jnp.float32)   # (n, 2)

    fan = 9 * C
    return {
        'w1': xavier(ks[0], (3, 3, C, C), fan, fan, gain_relu),   # conv1 (relu)
        'st1': bn_fold(ks[1], C, False),
        'w2': xavier(ks[2], (3, 3, C, C), fan, fan, 1.0),         # conv2 (identity)
        'st2': bn_fold(ks[3], C, True),
        'w_sq': xavier(ks[4], (3 * C, SE), 3 * C, SE, gain_relu),
        'b_sq': (0.05 * jax.random.normal(ks[5], (SE,))).astype(jnp.float32),
        'w_ex': xavier(ks[6], (SE, 2 * C), SE, 2 * C, 1.0),
        'b_ex': (0.05 * jax.random.normal(ks[7], (2 * C,))).astype(jnp.float32),
    }


# Pure-JAX reference (eval-mode semantics of the PyTorch forward) for checking.
def ref_forward(x_nchw, mask_buffers, params):
    mask_nchw, msum, msqrt = mask_buffers
    x = jnp.transpose(x_nchw, (0, 2, 3, 1))
    m = jnp.transpose(mask_nchw, (0, 2, 3, 1))
    B, H, W, C = x.shape
    msum = msum.reshape(B, 1)
    msqrt = msqrt.reshape(B, 1)

    def convblock(inp, w_hwio, st, relu):
        y = lax.conv_general_dilated(
            inp, w_hwio, window_strides=(1, 1), padding='SAME',
            dimension_numbers=('NHWC', 'HWIO', 'NHWC'),
            precision=lax.Precision.HIGHEST)
        y = y * m
        y = (y * st[:, 0] + st[:, 1]) * m
        return jnp.maximum(y, 0.0) if relu else y

    h = convblock(x, params['w1'], params['st1'], True)
    h = convblock(h, params['w2'], params['st2'], False)

    mean = jnp.sum(h, axis=(1, 2)) / msum
    bdiff = msqrt - B_AVG
    raw = h + (1.0 - m) * CRAZY_NEGATIVE_VALUE
    mx = jnp.max(raw, axis=(1, 2))
    pooled = jnp.concatenate([mean, mean * (bdiff / 10.0), mx], axis=1)
    hid = jnp.maximum(pooled @ params['w_sq'] + params['b_sq'], 0.0)
    e = hid @ params['w_ex'] + params['b_ex']
    gam, bet = e[:, :C], e[:, C:]
    sig = 1.0 / (1.0 + jnp.exp(-gam))
    h = (sig[:, None, None, :] * h + bet[:, None, None, :]) * m
    out = jnp.maximum(h + x, 0.0)
    return jnp.transpose(out, (0, 3, 1, 2))


if __name__ == "__main__":
    B, C, H, W = 2, 32, 8, 8       # channels = 32, board 8x8
    SE = 8                         # se_size = 8

    key = jax.random.PRNGKey(0)
    kx, kp = jax.random.split(key)

    # mask: per-batch valid sub-rectangle (variable board sizes)
    mask_np = np.zeros((B, 1, H, W), np.float32)
    mask_np[0, :, :8, :8] = 1.0
    mask_np[1, :, :6, :7] = 1.0
    mask = jnp.asarray(mask_np)
    mask_sum_hw = jnp.sum(mask, axis=(1, 2, 3)).reshape(B, 1)
    mask_sum_hw_sqrt = jnp.sqrt(mask_sum_hw)
    mask_buffers = (mask, mask_sum_hw, mask_sum_hw_sqrt)

    x = jax.random.normal(kx, (B, C, H, W), dtype=jnp.float32) * mask
    params = init_params(kp, C, SE)

    fwd = jax.jit(residual_block_forward)
    out = jax.block_until_ready(fwd(x, mask_buffers, params))

    ref = ref_forward(x, mask_buffers, params)
    np.testing.assert_allclose(np.asarray(out), np.asarray(ref),
                               rtol=2e-2, atol=2e-2)
    print("KERNEL_OK")
</pallas_src>

<mosaic_0001>
module attributes {stable_mosaic.version = 11 : i64} {
  func.func @kernel(%arg0: i32, %arg1: memref<32x128xf32, #tpu.memory_space<vmem>>, %arg2: memref<1x128xf32, #tpu.memory_space<vmem>>, %arg3: memref<1x128x4xf32, #tpu.memory_space<vmem>>, %arg4: memref<2x128xf32, #tpu.memory_space<vmem>>, %arg5: memref<9x1x128xf32, #tpu.memory_space<vmem>>, %arg6: memref<32x288xbf16, #tpu.memory_space<vmem>>, %arg7: memref<32x2xf32, #tpu.memory_space<vmem>>, %arg8: memref<32x288xbf16, #tpu.memory_space<vmem>>, %arg9: memref<32x2xf32, #tpu.memory_space<vmem>>, %arg10: memref<8x96xf32, #tpu.memory_space<vmem>>, %arg11: memref<8x1xf32, #tpu.memory_space<vmem>>, %arg12: memref<64x8xf32, #tpu.memory_space<vmem>>, %arg13: memref<64x1xf32, #tpu.memory_space<vmem>>, %arg14: memref<32x128xf32, #tpu.memory_space<vmem>>, %arg15: memref<288x128xbf16, #tpu.memory_space<vmem>>) attributes {dimension_semantics = [#tpu.dimension_semantics<parallel>], iteration_bounds = array<i64: 1>, scalar_prefetch = 0 : i64, scratch_operands = 1 : i64, tpu.core_type = #tpu.core_type<tc>, window_params = [{transform_indices = @transform_0, window_bounds = array<i64: 32, 128>}, {transform_indices = @transform_1, window_bounds = array<i64: 1, 128>}, {transform_indices = @transform_2, window_bounds = array<i64: 1, 128, 4>}, {pipeline_mode = #tpu.pipeline_mode<synchronous>, transform_indices = @transform_3, window_bounds = array<i64: 2, 128>}, {pipeline_mode = #tpu.pipeline_mode<synchronous>, transform_indices = @transform_4, window_bounds = array<i64: 9, 1, 128>}, {pipeline_mode = #tpu.pipeline_mode<synchronous>, transform_indices = @transform_5, window_bounds = array<i64: 32, 288>}, {pipeline_mode = #tpu.pipeline_mode<synchronous>, transform_indices = @transform_6, window_bounds = array<i64: 32, 2>}, {pipeline_mode = #tpu.pipeline_mode<synchronous>, transform_indices = @transform_7, window_bounds = array<i64: 32, 288>}, {pipeline_mode = #tpu.pipeline_mode<synchronous>, transform_indices = @transform_8, window_bounds = array<i64: 32, 2>}, {pipeline_mode = #tpu.pipeline_mode<synchronous>, transform_indices = @transform_9, window_bounds = array<i64: 8, 96>}, {pipeline_mode = #tpu.pipeline_mode<synchronous>, transform_indices = @transform_10, window_bounds = array<i64: 8, 1>}, {pipeline_mode = #tpu.pipeline_mode<synchronous>, transform_indices = @transform_11, window_bounds = array<i64: 64, 8>}, {pipeline_mode = #tpu.pipeline_mode<synchronous>, transform_indices = @transform_12, window_bounds = array<i64: 64, 1>}, {transform_indices = @transform_13, window_bounds = array<i64: 32, 128>}]} {
    %c0 = arith.constant 0 : index
    %c0_0 = arith.constant 0 : index
    %0 = vector.load %arg1[%c0, %c0_0] : memref<32x128xf32, #tpu.memory_space<vmem>>, vector<32x128xf32>
    %c0_1 = arith.constant 0 : index
    %c0_2 = arith.constant 0 : index
    %1 = vector.load %arg2[%c0_1, %c0_2] : memref<1x128xf32, #tpu.memory_space<vmem>>, vector<1x128xf32>
    %cst = arith.constant 0.000000e+00 : f32
    %2 = vector.broadcast %cst : f32 to vector<32x9xf32>
    %3 = vector.extract_strided_slice %0 {offsets = [0, 0], sizes = [32, 119], strides = [1, 1]} : vector<32x128xf32> to vector<32x119xf32>
    %4 = tpu.concatenate %2, %3 in 1 : vector<32x9xf32>, vector<32x119xf32> -> vector<32x128xf32>
    %c0_3 = arith.constant 0 : index
    %c0_4 = arith.constant 0 : index
    %c0_5 = arith.constant 0 : index
    %5 = vector.load %arg5[%c0_3, %c0_4, %c0_5] : memref<9x1x128xf32, #tpu.memory_space<vmem>>, vector<1x1x128xf32>
    %6 = vector.shape_cast %5 : vector<1x1x128xf32> to vector<1x128xf32>
    %7 = vector.broadcast %6 : vector<1x128xf32> to vector<32x128xf32>
    %8 = arith.mulf %4, %7 : vector<32x128xf32>
    %9 = arith.truncf %8 : vector<32x128xf32> to vector<32x128xbf16>
    %c0_6 = arith.constant 0 : index
    %c0_7 = arith.constant 0 : index
    %10 = vector.load %arg15[%c0_6, %c0_7] : memref<288x128xbf16, #tpu.memory_space<vmem>>, vector<32x128xbf16>
    tpu.vector_store %arg15[%c0_6, %c0_7], %9 {strides = array<i32>} : memref<288x128xbf16, #tpu.memory_space<vmem>>, vector<32x128xbf16>,
    %cst_8 = arith.constant 0.000000e+00 : f32
    %11 = vector.broadcast %cst_8 : f32 to vector<32x8xf32>
    %12 = vector.extract_strided_slice %0 {offsets = [0, 0], sizes = [32, 120], strides = [1, 1]} : vector<32x128xf32> to vector<32x120xf32>
    %13 = tpu.concatenate %11, %12 in 1 : vector<32x8xf32>, vector<32x120xf32> -> vector<32x128xf32>
    %c1 = arith.constant 1 : index
    %c0_9 = arith.constant 0 : index
    %c0_10 = arith.constant 0 : index
    %14 = vector.load %arg5[%c1, %c0_9, %c0_10] : memref<9x1x128xf32, #tpu.memory_space<vmem>>, vector<1x1x128xf32>
    %15 = vector.shape_cast %14 : vector<1x1x128xf32> to vector<1x128xf32>
    %16 = vector.broadcast %15 : vector<1x128xf32> to vector<32x128xf32>
    %17 = arith.mulf %13, %16 : vector<32x128xf32>
    %18 = arith.truncf %17 : vector<32x128xf32> to vector<32x128xbf16>
    %c32 = arith.constant 32 : index
    %c0_11 = arith.constant 0 : index
    %19 = vector.load %arg15[%c32, %c0_11] : memref<288x128xbf16, #tpu.memory_space<vmem>>, vector<32x128xbf16>
    tpu.vector_store %arg15[%c32, %c0_11], %18 {strides = array<i32>} : memref<288x128xbf16, #tpu.memory_space<vmem>>, vector<32x128xbf16>,
    %cst_12 = arith.constant 0.000000e+00 : f32
    %20 = vector.broadcast %cst_12 : f32 to vector<32x7xf32>
    %21 = vector.extract_strided_slice %0 {offsets = [0, 0], sizes = [32, 121], strides = [1, 1]} : vector<32x128xf32> to vector<32x121xf32>
    %22 = tpu.concatenate %20, %21 in 1 : vector<32x7xf32>, vector<32x121xf32> -> vector<32x128xf32>
    %c2 = arith.constant 2 : index
    %c0_13 = arith.constant 0 : index
    %c0_14 = arith.constant 0 : index
    %23 = vector.load %arg5[%c2, %c0_13, %c0_14] : memref<9x1x128xf32, #tpu.memory_space<vmem>>, vector<1x1x128xf32>
    %24 = vector.shape_cast %23 : vector<1x1x128xf32> to vector<1x128xf32>
    %25 = vector.broadcast %24 : vector<1x128xf32> to vector<32x128xf32>
    %26 = arith.mulf %22, %25 : vector<32x128xf32>
    %27 = arith.truncf %26 : vector<32x128xf32> to vector<32x128xbf16>
    %c64 = arith.constant 64 : index
    %c0_15 = arith.constant 0 : index
    %28 = vector.load %arg15[%c64, %c0_15] : memref<288x128xbf16, #tpu.memory_space<vmem>>, vector<32x128xbf16>
    tpu.vector_store %arg15[%c64, %c0_15], %27 {strides = array<i32>} : memref<288x128xbf16, #tpu.memory_space<vmem>>, vector<32x128xbf16>,
    %cst_16 = arith.constant 0.000000e+00 : f32
    %29 = vector.broadcast %cst_16 : f32 to vector<32x1xf32>
    %30 = vector.extract_strided_slice %0 {offsets = [0, 0], sizes = [32, 127], strides = [1, 1]} : vector<32x128xf32> to vector<32x127xf32>
    %31 = tpu.concatenate %29, %30 in 1 : vector<32x1xf32>, vector<32x127xf32> -> vector<32x128xf32>
    %c3 = arith.constant 3 : index
    %c0_17 = arith.constant 0 : index
    %c0_18 = arith.constant 0 : index
    %32 = vector.load %arg5[%c3, %c0_17, %c0_18] : memref<9x1x128xf32, #tpu.memory_space<vmem>>, vector<1x1x128xf32>
    %33 = vector.shape_cast %32 : vector<1x1x128xf32> to vector<1x128xf32>
    %34 = vector.broadcast %33 : vector<1x128xf32> to vector<32x128xf32>
    %35 = arith.mulf %31, %34 : vector<32x128xf32>
    %36 = arith.truncf %35 : vector<32x128xf32> to vector<32x128xbf16>
    %c96 = arith.constant 96 : index
    %c0_19 = arith.constant 0 : index
    %37 = vector.load %arg15[%c96, %c0_19] : memref<288x128xbf16, #tpu.memory_space<vmem>>, vector<32x128xbf16>
    tpu.vector_store %arg15[%c96, %c0_19], %36 {strides = array<i32>} : memref<288x128xbf16, #tpu.memory_space<vmem>>, vector<32x128xbf16>,
    %c4 = arith.constant 4 : index
    %c0_20 = arith.constant 0 : index
    %c0_21 = arith.constant 0 : index
    %38 = vector.load %arg5[%c4, %c0_20, %c0_21] : memref<9x1x128xf32, #tpu.memory_space<vmem>>, vector<1x1x128xf32>
    %39 = vector.shape_cast %38 : vector<1x1x128xf32> to vector<1x128xf32>
    %40 = vector.broadcast %39 : vector<1x128xf32> to vector<32x128xf32>
    %41 = arith.mulf %0, %40 : vector<32x128xf32>
    %42 = arith.truncf %41 : vector<32x128xf32> to vector<32x128xbf16>
    %c128 = arith.constant 128 : index
    %c0_22 = arith.constant 0 : index
    %43 = vector.load %arg15[%c128, %c0_22] : memref<288x128xbf16, #tpu.memory_space<vmem>>, vector<32x128xbf16>
    tpu.vector_store %arg15[%c128, %c0_22], %42 {strides = array<i32>} : memref<288x128xbf16, #tpu.memory_space<vmem>>, vector<32x128xbf16>,
    %cst_23 = arith.constant 0.000000e+00 : f32
    %44 = vector.broadcast %cst_23 : f32 to vector<32x1xf32>
    %45 = vector.extract_strided_slice %0 {offsets = [0, 1], sizes = [32, 127], strides = [1, 1]} : vector<32x128xf32> to vector<32x127xf32>
    %46 = tpu.concatenate %45, %44 in 1 : vector<32x127xf32>, vector<32x1xf32> -> vector<32x128xf32>
    %c5 = arith.constant 5 : index
    %c0_24 = arith.constant 0 : index
    %c0_25 = arith.constant 0 : index
    %47 = vector.load %arg5[%c5, %c0_24, %c0_25] : memref<9x1x128xf32, #tpu.memory_space<vmem>>, vector<1x1x128xf32>
    %48 = vector.shape_cast %47 : vector<1x1x128xf32> to vector<1x128xf32>
    %49 = vector.broadcast %48 : vector<1x128xf32> to vector<32x128xf32>
    %50 = arith.mulf %46, %49 : vector<32x128xf32>
    %51 = arith.truncf %50 : vector<32x128xf32> to vector<32x128xbf16>
    %c160 = arith.constant 160 : index
    %c0_26 = arith.constant 0 : index
    %52 = vector.load %arg15[%c160, %c0_26] : memref<288x128xbf16, #tpu.memory_space<vmem>>, vector<32x128xbf16>
    tpu.vector_store %arg15[%c160, %c0_26], %51 {strides = array<i32>} : memref<288x128xbf16, #tpu.memory_space<vmem>>, vector<32x128xbf16>,
    %cst_27 = arith.constant 0.000000e+00 : f32
    %53 = vector.broadcast %cst_27 : f32 to vector<32x7xf32>
    %54 = vector.extract_strided_slice %0 {offsets = [0, 7], sizes = [32, 121], strides = [1, 1]} : vector<32x128xf32> to vector<32x121xf32>
    %55 = tpu.concatenate %54, %53 in 1 : vector<32x121xf32>, vector<32x7xf32> -> vector<32x128xf32>
    %c6 = arith.constant 6 : index
    %c0_28 = arith.constant 0 : index
    %c0_29 = arith.constant 0 : index
    %56 = vector.load %arg5[%c6, %c0_28, %c0_29] : memref<9x1x128xf32, #tpu.memory_space<vmem>>, vector<1x1x128xf32>
    %57 = vector.shape_cast %56 : vector<1x1x128xf32> to vector<1x128xf32>
    %58 = vector.broadcast %57 : vector<1x128xf32> to vector<32x128xf32>
    %59 = arith.mulf %55, %58 : vector<32x128xf32>
    %60 = arith.truncf %59 : vector<32x128xf32> to vector<32x128xbf16>
    %c192 = arith.constant 192 : index
    %c0_30 = arith.constant 0 : index
    %61 = vector.load %arg15[%c192, %c0_30] : memref<288x128xbf16, #tpu.memory_space<vmem>>, vector<32x128xbf16>
    tpu.vector_store %arg15[%c192, %c0_30], %60 {strides = array<i32>} : memref<288x128xbf16, #tpu.memory_space<vmem>>, vector<32x128xbf16>,
    %cst_31 = arith.constant 0.000000e+00 : f32
    %62 = vector.broadcast %cst_31 : f32 to vector<32x8xf32>
    %63 = vector.extract_strided_slice %0 {offsets = [0, 8], sizes = [32, 120], strides = [1, 1]} : vector<32x128xf32> to vector<32x120xf32>
    %64 = tpu.concatenate %63, %62 in 1 : vector<32x120xf32>, vector<32x8xf32> -> vector<32x128xf32>
    %c7 = arith.constant 7 : index
    %c0_32 = arith.constant 0 : index
    %c0_33 = arith.constant 0 : index
    %65 = vector.load %arg5[%c7, %c0_32, %c0_33] : memref<9x1x128xf32, #tpu.memory_space<vmem>>, vector<1x1x128xf32>
    %66 = vector.shape_cast %65 : vector<1x1x128xf32> to vector<1x128xf32>
    %67 = vector.broadcast %66 : vector<1x128xf32> to vector<32x128xf32>
    %68 = arith.mulf %64, %67 : vector<32x128xf32>
    %69 = arith.truncf %68 : vector<32x128xf32> to vector<32x128xbf16>
    %c224 = arith.constant 224 : index
    %c0_34 = arith.constant 0 : index
    %70 = vector.load %arg15[%c224, %c0_34] : memref<288x128xbf16, #tpu.memory_space<vmem>>, vector<32x128xbf16>
    tpu.vector_store %arg15[%c224, %c0_34], %69 {strides = array<i32>} : memref<288x128xbf16, #tpu.memory_space<vmem>>, vector<32x128xbf16>,
    %cst_35 = arith.constant 0.000000e+00 : f32
    %71 = vector.broadcast %cst_35 : f32 to vector<32x9xf32>
    %72 = vector.extract_strided_slice %0 {offsets = [0, 9], sizes = [32, 119], strides = [1, 1]} : vector<32x128xf32> to vector<32x119xf32>
    %73 = tpu.concatenate %72, %71 in 1 : vector<32x119xf32>, vector<32x9xf32> -> vector<32x128xf32>
    %c8 = arith.constant 8 : index
    %c0_36 = arith.constant 0 : index
    %c0_37 = arith.constant 0 : index
    %74 = vector.load %arg5[%c8, %c0_36, %c0_37] : memref<9x1x128xf32, #tpu.memory_space<vmem>>, vector<1x1x128xf32>
    %75 = vector.shape_cast %74 : vector<1x1x128xf32> to vector<1x128xf32>
    %76 = vector.broadcast %75 : vector<1x128xf32> to vector<32x128xf32>
    %77 = arith.mulf %73, %76 : vector<32x128xf32>
    %78 = arith.truncf %77 : vector<32x128xf32> to vector<32x128xbf16>
    %c256 = arith.constant 256 : index
    %c0_38 = arith.constant 0 : index
    %79 = vector.load %arg15[%c256, %c0_38] : memref<288x128xbf16, #tpu.memory_space<vmem>>, vector<32x128xbf16>
    tpu.vector_store %arg15[%c256, %c0_38], %78 {strides = array<i32>} : memref<288x128xbf16, #tpu.memory_space<vmem>>, vector<32x128xbf16>,
    %c0_39 = arith.constant 0 : index
    %c0_40 = arith.constant 0 : index
    %80 = vector.load %arg6[%c0_39, %c0_40] : memref<32x288xbf16, #tpu.memory_space<vmem>>, vector<32x288xbf16>
    %c0_41 = arith.constant 0 : index
    %c0_42 = arith.constant 0 : index
    %81 = vector.load %arg15[%c0_41, %c0_42] : memref<288x128xbf16, #tpu.memory_space<vmem>>, vector<288x128xbf16>
    %cst_43 = arith.constant dense<0.000000e+00> : vector<32x128xf32>
    %82 = tpu.matmul %80, %81, %cst_43 {dimension_numbers = #tpu.dot_dimension_numbers<[1], [0], [0], [1], [0, 0, 1, 1], [], []>} : vector<32x288xbf16>, vector<288x128xbf16>, vector<32x128xf32> -> vector<32x128xf32>
    %c0_44 = arith.constant 0 : index
    %c0_45 = arith.constant 0 : index
    %83 = vector.load %arg7[%c0_44, %c0_45] : memref<32x2xf32, #tpu.memory_space<vmem>>, vector<32x1xf32>
    %c0_46 = arith.constant 0 : index
    %c1_47 = arith.constant 1 : index
    %84 = vector.load %arg7[%c0_46, %c1_47] : memref<32x2xf32, #tpu.memory_space<vmem>>, vector<32x1xf32>
    %85 = vector.broadcast %83 : vector<32x1xf32> to vector<32x128xf32>
    %86 = arith.mulf %82, %85 : vector<32x128xf32>
    %87 = vector.broadcast %84 : vector<32x1xf32> to vector<32x128xf32>
    %88 = arith.addf %86, %87 : vector<32x128xf32>
    %89 = vector.broadcast %1 : vector<1x128xf32> to vector<32x128xf32>
    %90 = arith.mulf %88, %89 : vector<32x128xf32>
    %cst_48 = arith.constant 0.000000e+00 : f32
    %91 = vector.broadcast %cst_48 : f32 to vector<32x128xf32>
    %92 = arith.maximumf %90, %91 : vector<32x128xf32>
    %cst_49 = arith.constant 0.000000e+00 : f32
    %93 = vector.broadcast %cst_49 : f32 to vector<32x9xf32>
    %94 = vector.extract_strided_slice %92 {offsets = [0, 0], sizes = [32, 119], strides = [1, 1]} : vector<32x128xf32> to vector<32x119xf32>
    %95 = tpu.concatenate %93, %94 in 1 : vector<32x9xf32>, vector<32x119xf32> -> vector<32x128xf32>
    %c0_50 = arith.constant 0 : index
    %c0_51 = arith.constant 0 : index
    %c0_52 = arith.constant 0 : index
    %96 = vector.load %arg5[%c0_50, %c0_51, %c0_52] : memref<9x1x128xf32, #tpu.memory_space<vmem>>, vector<1x1x128xf32>
    %97 = vector.shape_cast %96 : vector<1x1x128xf32> to vector<1x128xf32>
    %98 = vector.broadcast %97 : vector<1x128xf32> to vector<32x128xf32>
    %99 = arith.mulf %95, %98 : vector<32x128xf32>
    %100 = arith.truncf %99 : vector<32x128xf32> to vector<32x128xbf16>
    %c0_53 = arith.constant 0 : index
    %c0_54 = arith.constant 0 : index
    %101 = vector.load %arg15[%c0_53, %c0_54] : memref<288x128xbf16, #tpu.memory_space<vmem>>, vector<32x128xbf16>
    tpu.vector_store %arg15[%c0_53, %c0_54], %100 {strides = array<i32>} : memref<288x128xbf16, #tpu.memory_space<vmem>>, vector<32x128xbf16>,
    %cst_55 = arith.constant 0.000000e+00 : f32
    %102 = vector.broadcast %cst_55 : f32 to vector<32x8xf32>
    %103 = vector.extract_strided_slice %92 {offsets = [0, 0], sizes = [32, 120], strides = [1, 1]} : vector<32x128xf32> to vector<32x120xf32>
    %104 = tpu.concatenate %102, %103 in 1 : vector<32x8xf32>, vector<32x120xf32> -> vector<32x128xf32>
    %c1_56 = arith.constant 1 : index
    %c0_57 = arith.constant 0 : index
    %c0_58 = arith.constant 0 : index
    %105 = vector.load %arg5[%c1_56, %c0_57, %c0_58] : memref<9x1x128xf32, #tpu.memory_space<vmem>>, vector<1x1x128xf32>
    %106 = vector.shape_cast %105 : vector<1x1x128xf32> to vector<1x128xf32>
    %107 = vector.broadcast %106 : vector<1x128xf32> to vector<32x128xf32>
    %108 = arith.mulf %104, %107 : vector<32x128xf32>
    %109 = arith.truncf %108 : vector<32x128xf32> to vector<32x128xbf16>
    %c32_59 = arith.constant 32 : index
    %c0_60 = arith.constant 0 : index
    %110 = vector.load %arg15[%c32_59, %c0_60] : memref<288x128xbf16, #tpu.memory_space<vmem>>, vector<32x128xbf16>
    tpu.vector_store %arg15[%c32_59, %c0_60], %109 {strides = array<i32>} : memref<288x128xbf16, #tpu.memory_space<vmem>>, vector<32x128xbf16>,
    %cst_61 = arith.constant 0.000000e+00 : f32
    %111 = vector.broadcast %cst_61 : f32 to vector<32x7xf32>
    %112 = vector.extract_strided_slice %92 {offsets = [0, 0], sizes = [32, 121], strides = [1, 1]} : vector<32x128xf32> to vector<32x121xf32>
    %113 = tpu.concatenate %111, %112 in 1 : vector<32x7xf32>, vector<32x121xf32> -> vector<32x128xf32>
    %c2_62 = arith.constant 2 : index
    %c0_63 = arith.constant 0 : index
    %c0_64 = arith.constant 0 : index
    %114 = vector.load %arg5[%c2_62, %c0_63, %c0_64] : memref<9x1x128xf32, #tpu.memory_space<vmem>>, vector<1x1x128xf32>
    %115 = vector.shape_cast %114 : vector<1x1x128xf32> to vector<1x128xf32>
    %116 = vector.broadcast %115 : vector<1x128xf32> to vector<32x128xf32>
    %117 = arith.mulf %113, %116 : vector<32x128xf32>
    %118 = arith.truncf %117 : vector<32x128xf32> to vector<32x128xbf16>
    %c64_65 = arith.constant 64 : index
    %c0_66 = arith.constant 0 : index
    %119 = vector.load %arg15[%c64_65, %c0_66] : memref<288x128xbf16, #tpu.memory_space<vmem>>, vector<32x128xbf16>
    tpu.vector_store %arg15[%c64_65, %c0_66], %118 {strides = array<i32>} : memref<288x128xbf16, #tpu.memory_space<vmem>>, vector<32x128xbf16>,
    %cst_67 = arith.constant 0.000000e+00 : f32
    %120 = vector.broadcast %cst_67 : f32 to vector<32x1xf32>
    %121 = vector.extract_strided_slice %92 {offsets = [0, 0], sizes = [32, 127], strides = [1, 1]} : vector<32x128xf32> to vector<32x127xf32>
    %122 = tpu.concatenate %120, %121 in 1 : vector<32x1xf32>, vector<32x127xf32> -> vector<32x128xf32>
    %c3_68 = arith.constant 3 : index
    %c0_69 = arith.constant 0 : index
    %c0_70 = arith.constant 0 : index
    %123 = vector.load %arg5[%c3_68, %c0_69, %c0_70] : memref<9x1x128xf32, #tpu.memory_space<vmem>>, vector<1x1x128xf32>
    %124 = vector.shape_cast %123 : vector<1x1x128xf32> to vector<1x128xf32>
    %125 = vector.broadcast %124 : vector<1x128xf32> to vector<32x128xf32>
    %126 = arith.mulf %122, %125 : vector<32x128xf32>
    %127 = arith.truncf %126 : vector<32x128xf32> to vector<32x128xbf16>
    %c96_71 = arith.constant 96 : index
    %c0_72 = arith.constant 0 : index
    %128 = vector.load %arg15[%c96_71, %c0_72] : memref<288x128xbf16, #tpu.memory_space<vmem>>, vector<32x128xbf16>
    tpu.vector_store %arg15[%c96_71, %c0_72], %127 {strides = array<i32>} : memref<288x128xbf16, #tpu.memory_space<vmem>>, vector<32x128xbf16>,
    %c4_73 = arith.constant 4 : index
    %c0_74 = arith.constant 0 : index
    %c0_75 = arith.constant 0 : index
    %129 = vector.load %arg5[%c4_73, %c0_74, %c0_75] : memref<9x1x128xf32, #tpu.memory_space<vmem>>, vector<1x1x128xf32>
    %130 = vector.shape_cast %129 : vector<1x1x128xf32> to vector<1x128xf32>
    %131 = vector.broadcast %130 : vector<1x128xf32> to vector<32x128xf32>
    %132 = arith.mulf %92, %131 : vector<32x128xf32>
    %133 = arith.truncf %132 : vector<32x128xf32> to vector<32x128xbf16>
    %c128_76 = arith.constant 128 : index
    %c0_77 = arith.constant 0 : index
    %134 = vector.load %arg15[%c128_76, %c0_77] : memref<288x128xbf16, #tpu.memory_space<vmem>>, vector<32x128xbf16>
    tpu.vector_store %arg15[%c128_76, %c0_77], %133 {strides = array<i32>} : memref<288x128xbf16, #tpu.memory_space<vmem>>, vector<32x128xbf16>,
    %cst_78 = arith.constant 0.000000e+00 : f32
    %135 = vector.broadcast %cst_78 : f32 to vector<32x1xf32>
    %136 = vector.extract_strided_slice %92 {offsets = [0, 1], sizes = [32, 127], strides = [1, 1]} : vector<32x128xf32> to vector<32x127xf32>
    %137 = tpu.concatenate %136, %135 in 1 : vector<32x127xf32>, vector<32x1xf32> -> vector<32x128xf32>
    %c5_79 = arith.constant 5 : index
    %c0_80 = arith.constant 0 : index
    %c0_81 = arith.constant 0 : index
    %138 = vector.load %arg5[%c5_79, %c0_80, %c0_81] : memref<9x1x128xf32, #tpu.memory_space<vmem>>, vector<1x1x128xf32>
    %139 = vector.shape_cast %138 : vector<1x1x128xf32> to vector<1x128xf32>
    %140 = vector.broadcast %139 : vector<1x128xf32> to vector<32x128xf32>
    %141 = arith.mulf %137, %140 : vector<32x128xf32>
    %142 = arith.truncf %141 : vector<32x128xf32> to vector<32x128xbf16>
    %c160_82 = arith.constant 160 : index
    %c0_83 = arith.constant 0 : index
    %143 = vector.load %arg15[%c160_82, %c0_83] : memref<288x128xbf16, #tpu.memory_space<vmem>>, vector<32x128xbf16>
    tpu.vector_store %arg15[%c160_82, %c0_83], %142 {strides = array<i32>} : memref<288x128xbf16, #tpu.memory_space<vmem>>, vector<32x128xbf16>,
    %cst_84 = arith.constant 0.000000e+00 : f32
    %144 = vector.broadcast %cst_84 : f32 to vector<32x7xf32>
    %145 = vector.extract_strided_slice %92 {offsets = [0, 7], sizes = [32, 121], strides = [1, 1]} : vector<32x128xf32> to vector<32x121xf32>
    %146 = tpu.concatenate %145, %144 in 1 : vector<32x121xf32>, vector<32x7xf32> -> vector<32x128xf32>
    %c6_85 = arith.constant 6 : index
    %c0_86 = arith.constant 0 : index
    %c0_87 = arith.constant 0 : index
    %147 = vector.load %arg5[%c6_85, %c0_86, %c0_87] : memref<9x1x128xf32, #tpu.memory_space<vmem>>, vector<1x1x128xf32>
    %148 = vector.shape_cast %147 : vector<1x1x128xf32> to vector<1x128xf32>
    %149 = vector.broadcast %148 : vector<1x128xf32> to vector<32x128xf32>
    %150 = arith.mulf %146, %149 : vector<32x128xf32>
    %151 = arith.truncf %150 : vector<32x128xf32> to vector<32x128xbf16>
    %c192_88 = arith.constant 192 : index
    %c0_89 = arith.constant 0 : index
    %152 = vector.load %arg15[%c192_88, %c0_89] : memref<288x128xbf16, #tpu.memory_space<vmem>>, vector<32x128xbf16>
    tpu.vector_store %arg15[%c192_88, %c0_89], %151 {strides = array<i32>} : memref<288x128xbf16, #tpu.memory_space<vmem>>, vector<32x128xbf16>,
    %cst_90 = arith.constant 0.000000e+00 : f32
    %153 = vector.broadcast %cst_90 : f32 to vector<32x8xf32>
    %154 = vector.extract_strided_slice %92 {offsets = [0, 8], sizes = [32, 120], strides = [1, 1]} : vector<32x128xf32> to vector<32x120xf32>
    %155 = tpu.concatenate %154, %153 in 1 : vector<32x120xf32>, vector<32x8xf32> -> vector<32x128xf32>
    %c7_91 = arith.constant 7 : index
    %c0_92 = arith.constant 0 : index
    %c0_93 = arith.constant 0 : index
    %156 = vector.load %arg5[%c7_91, %c0_92, %c0_93] : memref<9x1x128xf32, #tpu.memory_space<vmem>>, vector<1x1x128xf32>
    %157 = vector.shape_cast %156 : vector<1x1x128xf32> to vector<1x128xf32>
    %158 = vector.broadcast %157 : vector<1x128xf32> to vector<32x128xf32>
    %159 = arith.mulf %155, %158 : vector<32x128xf32>
    %160 = arith.truncf %159 : vector<32x128xf32> to vector<32x128xbf16>
    %c224_94 = arith.constant 224 : index
    %c0_95 = arith.constant 0 : index
    %161 = vector.load %arg15[%c224_94, %c0_95] : memref<288x128xbf16, #tpu.memory_space<vmem>>, vector<32x128xbf16>
    tpu.vector_store %arg15[%c224_94, %c0_95], %160 {strides = array<i32>} : memref<288x128xbf16, #tpu.memory_space<vmem>>, vector<32x128xbf16>,
    %cst_96 = arith.constant 0.000000e+00 : f32
    %162 = vector.broadcast %cst_96 : f32 to vector<32x9xf32>
    %163 = vector.extract_strided_slice %92 {offsets = [0, 9], sizes = [32, 119], strides = [1, 1]} : vector<32x128xf32> to vector<32x119xf32>
    %164 = tpu.concatenate %163, %162 in 1 : vector<32x119xf32>, vector<32x9xf32> -> vector<32x128xf32>
    %c8_97 = arith.constant 8 : index
    %c0_98 = arith.constant 0 : index
    %c0_99 = arith.constant 0 : index
    %165 = vector.load %arg5[%c8_97, %c0_98, %c0_99] : memref<9x1x128xf32, #tpu.memory_space<vmem>>, vector<1x1x128xf32>
    %166 = vector.shape_cast %165 : vector<1x1x128xf32> to vector<1x128xf32>
    %167 = vector.broadcast %166 : vector<1x128xf32> to vector<32x128xf32>
    %168 = arith.mulf %164, %167 : vector<32x128xf32>
    %169 = arith.truncf %168 : vector<32x128xf32> to vector<32x128xbf16>
    %c256_100 = arith.constant 256 : index
    %c0_101 = arith.constant 0 : index
    %170 = vector.load %arg15[%c256_100, %c0_101] : memref<288x128xbf16, #tpu.memory_space<vmem>>, vector<32x128xbf16>
    tpu.vector_store %arg15[%c256_100, %c0_101], %169 {strides = array<i32>} : memref<288x128xbf16, #tpu.memory_space<vmem>>, vector<32x128xbf16>,
    %c0_102 = arith.constant 0 : index
    %c0_103 = arith.constant 0 : index
    %171 = vector.load %arg8[%c0_102, %c0_103] : memref<32x288xbf16, #tpu.memory_space<vmem>>, vector<32x288xbf16>
    %c0_104 = arith.constant 0 : index
    %c0_105 = arith.constant 0 : index
    %172 = vector.load %arg15[%c0_104, %c0_105] : memref<288x128xbf16, #tpu.memory_space<vmem>>, vector<288x128xbf16>
    %cst_106 = arith.constant dense<0.000000e+00> : vector<32x128xf32>
    %173 = tpu.matmul %171, %172, %cst_106 {dimension_numbers = #tpu.dot_dimension_numbers<[1], [0], [0], [1], [0, 0, 1, 1], [], []>} : vector<32x288xbf16>, vector<288x128xbf16>, vector<32x128xf32> -> vector<32x128xf32>
    %c0_107 = arith.constant 0 : index
    %c0_108 = arith.constant 0 : index
    %174 = vector.load %arg9[%c0_107, %c0_108] : memref<32x2xf32, #tpu.memory_space<vmem>>, vector<32x1xf32>
    %c0_109 = arith.constant 0 : index
    %c1_110 = arith.constant 1 : index
    %175 = vector.load %arg9[%c0_109, %c1_110] : memref<32x2xf32, #tpu.memory_space<vmem>>, vector<32x1xf32>
    %176 = vector.broadcast %174 : vector<32x1xf32> to vector<32x128xf32>
    %177 = arith.mulf %173, %176 : vector<32x128xf32>
    %178 = vector.broadcast %175 : vector<32x1xf32> to vector<32x128xf32>
    %179 = arith.addf %177, %178 : vector<32x128xf32>
    %180 = vector.broadcast %1 : vector<1x128xf32> to vector<32x128xf32>
    %181 = arith.mulf %179, %180 : vector<32x128xf32>
    %c0_111 = arith.constant 0 : index
    %c0_112 = arith.constant 0 : index
    %c0_113 = arith.constant 0 : index
    %182 = vector.load %arg3[%c0_111, %c0_112, %c0_113] : memref<1x128x4xf32, #tpu.memory_space<vmem>>, vector<1x128x4xf32>
    %183 = vector.shape_cast %182 : vector<1x128x4xf32> to vector<128x4xf32>
    %cst_114 = arith.constant dense<0.000000e+00> : vector<32x4xf32>
    %184 = tpu.matmul %181, %183, %cst_114 {dimension_numbers = #tpu.dot_dimension_numbers<[1], [0], [0], [1], [0, 0, 1, 1], [], []>} : vector<32x128xf32>, vector<128x4xf32>, vector<32x4xf32> -> vector<32x4xf32>
    %cst_115 = arith.constant 1.000000e+00 : f32
    %185 = vector.broadcast %cst_115 : f32 to vector<1x128xf32>
    %186 = arith.subf %185, %1 : vector<1x128xf32>
    %cst_116 = arith.constant -5.000000e+03 : f32
    %187 = vector.broadcast %cst_116 : f32 to vector<1x128xf32>
    %188 = arith.mulf %186, %187 : vector<1x128xf32>
    %189 = vector.broadcast %188 : vector<1x128xf32> to vector<32x128xf32>
    %190 = arith.addf %181, %189 : vector<32x128xf32>
    %191 = vector.extract_strided_slice %190 {offsets = [0, 0], sizes = [32, 64], strides = [1, 1]} : vector<32x128xf32> to vector<32x64xf32>
    %cst_117 = arith.constant dense<0xFF800000> : vector<32xf32>
    %192 = vector.multi_reduction <maximumf>, %191, %cst_117 [1] : vector<32x64xf32> to vector<32xf32>
    %193 = vector.shape_cast %192 : vector<32xf32> to vector<32x1xf32>
    %194 = vector.extract_strided_slice %190 {offsets = [0, 64], sizes = [32, 64], strides = [1, 1]} : vector<32x128xf32> to vector<32x64xf32>
    %cst_118 = arith.constant dense<0xFF800000> : vector<32xf32>
    %195 = vector.multi_reduction <maximumf>, %194, %cst_118 [1] : vector<32x64xf32> to vector<32xf32>
    %196 = vector.shape_cast %195 : vector<32xf32> to vector<32x1xf32>
    %197 = tpu.concatenate %193, %196 in 1 : vector<32x1xf32>, vector<32x1xf32> -> vector<32x2xf32>
    %198 = vector.extract_strided_slice %184 {offsets = [0, 0], sizes = [32, 2], strides = [1, 1]} : vector<32x4xf32> to vector<32x2xf32>
    %199 = vector.extract_strided_slice %184 {offsets = [0, 2], sizes = [32, 2], strides = [1, 1]} : vector<32x4xf32> to vector<32x2xf32>
    %200 = tpu.concatenate %198, %199, %197 in 0 : vector<32x2xf32>, vector<32x2xf32>, vector<32x2xf32> -> vector<96x2xf32>
    %c0_119 = arith.constant 0 : index
    %c0_120 = arith.constant 0 : index
    %201 = vector.load %arg10[%c0_119, %c0_120] : memref<8x96xf32, #tpu.memory_space<vmem>>, vector<8x96xf32>
    %cst_121 = arith.constant dense<0.000000e+00> : vector<8x2xf32>
    %202 = tpu.matmul %201, %200, %cst_121 {dimension_numbers = #tpu.dot_dimension_numbers<[1], [0], [0], [1], [0, 0, 1, 1], [], []>} : vector<8x96xf32>, vector<96x2xf32>, vector<8x2xf32> -> vector<8x2xf32>
    %c0_122 = arith.constant 0 : index
    %c0_123 = arith.constant 0 : index
    %203 = vector.load %arg11[%c0_122, %c0_123] : memref<8x1xf32, #tpu.memory_space<vmem>>, vector<8x1xf32>
    %204 = vector.broadcast %203 : vector<8x1xf32> to vector<8x2xf32>
    %205 = arith.addf %202, %204 : vector<8x2xf32>
    %cst_124 = arith.constant 0.000000e+00 : f32
    %206 = vector.broadcast %cst_124 : f32 to vector<8x2xf32>
    %207 = arith.maximumf %205, %206 : vector<8x2xf32>
    %c0_125 = arith.constant 0 : index
    %c0_126 = arith.constant 0 : index
    %208 = vector.load %arg12[%c0_125, %c0_126] : memref<64x8xf32, #tpu.memory_space<vmem>>, vector<64x8xf32>
    %cst_127 = arith.constant dense<0.000000e+00> : vector<64x2xf32>
    %209 = tpu.matmul %208, %207, %cst_127 {dimension_numbers = #tpu.dot_dimension_numbers<[1], [0], [0], [1], [0, 0, 1, 1], [], []>} : vector<64x8xf32>, vector<8x2xf32>, vector<64x2xf32> -> vector<64x2xf32>
    %c0_128 = arith.constant 0 : index
    %c0_129 = arith.constant 0 : index
    %210 = vector.load %arg13[%c0_128, %c0_129] : memref<64x1xf32, #tpu.memory_space<vmem>>, vector<64x1xf32>
    %211 = vector.broadcast %210 : vector<64x1xf32> to vector<64x2xf32>
    %212 = arith.addf %209, %211 : vector<64x2xf32>
    %213 = vector.extract_strided_slice %212 {offsets = [0, 0], sizes = [32, 2], strides = [1, 1]} : vector<64x2xf32> to vector<32x2xf32>
    %cst_130 = arith.constant 0.000000e+00 : f32
    %214 = vector.broadcast %cst_130 : f32 to vector<32x2xf32>
    %215 = arith.subf %214, %213 : vector<32x2xf32>
    %216 = math.exp %215 : vector<32x2xf32>
    %cst_131 = arith.constant 1.000000e+00 : f32
    %217 = vector.broadcast %cst_131 : f32 to vector<32x2xf32>
    %218 = arith.addf %217, %216 : vector<32x2xf32>
    %cst_132 = arith.constant 1.000000e+00 : f32
    %219 = vector.broadcast %cst_132 : f32 to vector<32x2xf32>
    %220 = arith.divf %219, %218 : vector<32x2xf32>
    %221 = vector.extract_strided_slice %212 {offsets = [32, 0], sizes = [32, 2], strides = [1, 1]} : vector<64x2xf32> to vector<32x2xf32>
    %222 = tpu.concatenate %220, %221 in 0 : vector<32x2xf32>, vector<32x2xf32> -> vector<64x2xf32>
    %c0_133 = arith.constant 0 : index
    %c0_134 = arith.constant 0 : index
    %223 = vector.load %arg4[%c0_133, %c0_134] : memref<2x128xf32, #tpu.memory_space<vmem>>, vector<2x128xf32>
    %cst_135 = arith.constant dense<0.000000e+00> : vector<64x128xf32>
    %224 = tpu.matmul %222, %223, %cst_135 {dimension_numbers = #tpu.dot_dimension_numbers<[1], [0], [0], [1], [0, 0, 1, 1], [], []>} : vector<64x2xf32>, vector<2x128xf32>, vector<64x128xf32> -> vector<64x128xf32>
    %225 = vector.extract_strided_slice %224 {offsets = [0, 0], sizes = [32, 128], strides = [1, 1]} : vector<64x128xf32> to vector<32x128xf32>
    %226 = arith.mulf %225, %181 : vector<32x128xf32>
    %227 = vector.extract_strided_slice %224 {offsets = [32, 0], sizes = [32, 128], strides = [1, 1]} : vector<64x128xf32> to vector<32x128xf32>
    %228 = arith.addf %226, %227 : vector<32x128xf32>
    %229 = vector.broadcast %1 : vector<1x128xf32> to vector<32x128xf32>
    %230 = arith.mulf %228, %229 : vector<32x128xf32>
    %231 = arith.addf %230, %0 : vector<32x128xf32>
    %cst_136 = arith.constant 0.000000e+00 : f32
    %232 = vector.broadcast %cst_136 : f32 to vector<32x128xf32>
    %233 = arith.maximumf %231, %232 : vector<32x128xf32>
    %c0_137 = arith.constant 0 : index
    %c0_138 = arith.constant 0 : index
    %234 = vector.load %arg14[%c0_137, %c0_138] : memref<32x128xf32, #tpu.memory_space<vmem>>, vector<32x128xf32>
    tpu.vector_store %arg14[%c0_137, %c0_138], %233 {strides = array<i32>} : memref<32x128xf32, #tpu.memory_space<vmem>>, vector<32x128xf32>,
    return
  }
  func.func @transform_0(%arg0: i32) -> (i32, i32) {
    %c0_i32 = arith.constant 0 : i32
    %c0_i32_0 = arith.constant 0 : i32
    return %c0_i32, %arg0 : i32, i32
  }
  func.func @transform_1(%arg0: i32) -> (i32, i32) {
    %c0_i32 = arith.constant 0 : i32
    %c0_i32_0 = arith.constant 0 : i32
    return %c0_i32, %arg0 : i32, i32
  }
  func.func @transform_2(%arg0: i32) -> (i32, i32, i32) {
    %c0_i32 = arith.constant 0 : i32
    %c0_i32_0 = arith.constant 0 : i32
    %c0_i32_1 = arith.constant 0 : i32
    return %arg0, %c0_i32, %c0_i32_0 : i32, i32, i32
  }
  func.func @transform_3(%arg0: i32) -> (i32, i32) {
    %c0_i32 = arith.constant 0 : i32
    %c0_i32_0 = arith.constant 0 : i32
    %c0_i32_1 = arith.constant 0 : i32
    return %c0_i32, %c0_i32_0 : i32, i32
  }
  func.func @transform_4(%arg0: i32) -> (i32, i32, i32) {
    %c0_i32 = arith.constant 0 : i32
    %c0_i32_0 = arith.constant 0 : i32
    %c0_i32_1 = arith.constant 0 : i32
    %c0_i32_2 = arith.constant 0 : i32
    return %c0_i32, %c0_i32_0, %c0_i32_1 : i32, i32, i32
  }
  func.func @transform_5(%arg0: i32) -> (i32, i32) {
    %c0_i32 = arith.constant 0 : i32
    %c0_i32_0 = arith.constant 0 : i32
    %c0_i32_1 = arith.constant 0 : i32
    return %c0_i32, %c0_i32_0 : i32, i32
  }
  func.func @transform_6(%arg0: i32) -> (i32, i32) {
    %c0_i32 = arith.constant 0 : i32
    %c0_i32_0 = arith.constant 0 : i32
    %c0_i32_1 = arith.constant 0 : i32
    return %c0_i32, %c0_i32_0 : i32, i32
  }
  func.func @transform_7(%arg0: i32) -> (i32, i32) {
    %c0_i32 = arith.constant 0 : i32
    %c0_i32_0 = arith.constant 0 : i32
    %c0_i32_1 = arith.constant 0 : i32
    return %c0_i32, %c0_i32_0 : i32, i32
  }
  func.func @transform_8(%arg0: i32) -> (i32, i32) {
    %c0_i32 = arith.constant 0 : i32
    %c0_i32_0 = arith.constant 0 : i32
    %c0_i32_1 = arith.constant 0 : i32
    return %c0_i32, %c0_i32_0 : i32, i32
  }
  func.func @transform_9(%arg0: i32) -> (i32, i32) {
    %c0_i32 = arith.constant 0 : i32
    %c0_i32_0 = arith.constant 0 : i32
    %c0_i32_1 = arith.constant 0 : i32
    return %c0_i32, %c0_i32_0 : i32, i32
  }
  func.func @transform_10(%arg0: i32) -> (i32, i32) {
    %c0_i32 = arith.constant 0 : i32
    %c0_i32_0 = arith.constant 0 : i32
    %c0_i32_1 = arith.constant 0 : i32
    return %c0_i32, %c0_i32_0 : i32, i32
  }
  func.func @transform_11(%arg0: i32) -> (i32, i32) {
    %c0_i32 = arith.constant 0 : i32
    %c0_i32_0 = arith.constant 0 : i32
    %c0_i32_1 = arith.constant 0 : i32
    return %c0_i32, %c0_i32_0 : i32, i32
  }
  func.func @transform_12(%arg0: i32) -> (i32, i32) {
    %c0_i32 = arith.constant 0 : i32
    %c0_i32_0 = arith.constant 0 : i32
    %c0_i32_1 = arith.constant 0 : i32
    return %c0_i32, %c0_i32_0 : i32, i32
  }
  func.func @transform_13(%arg0: i32) -> (i32, i32) {
    %c0_i32 = arith.constant 0 : i32
    %c0_i32_0 = arith.constant 0 : i32
    return %c0_i32, %arg0 : i32, i32
  }
}

</mosaic_0001>

<llo_original>
// kernel: residual_block_forward.1
$region0: #{residual_block_forward.1}
  #allocation0 [shape = 'u32[]', space=smem, size = 0x4, offset = 0x4, fixed_abs, tag = 'smem constant byte address 0x4 - core index']
  #allocation1 [shape = 'u32[72,128]{1,0:T(1,128)}', space=vmem, size = 0x9000, scoped, tag = 'internal scratch']
  #allocation2 [shape = 'bf16[288,128]{1,0:T(8,128)(2,1)}', space=vmem, size = 0x12000, scoped, tag = 'scratch operand']
  %s0 = inlined_call_operand.vmem [shape: f32[32,128], index: 0, kind: input, shape index: {}]
  %s1 = inlined_call_operand.vmem [shape: f32[1,128], index: 1, kind: input, shape index: {}]
  %s2 = inlined_call_operand.vmem [shape: f32[1,128,4], index: 2, kind: input, shape index: {}]
  %s3 = inlined_call_operand.vmem [shape: f32[2,128], index: 3, kind: input, shape index: {}]
  %s4 = inlined_call_operand.vmem [shape: f32[9,1,128], index: 4, kind: input, shape index: {}]
  %s5 = inlined_call_operand.vmem [shape: bf16[32,288], index: 5, kind: input, shape index: {}]
  %s6 = inlined_call_operand.vmem [shape: f32[32,2], index: 6, kind: input, shape index: {}]
  %s7 = inlined_call_operand.vmem [shape: bf16[32,288], index: 7, kind: input, shape index: {}]
  %s8 = inlined_call_operand.vmem [shape: f32[32,2], index: 8, kind: input, shape index: {}]
  %s9 = inlined_call_operand.vmem [shape: f32[8,96], index: 9, kind: input, shape index: {}]
  %s10 = inlined_call_operand.vmem [shape: f32[8,1], index: 10, kind: input, shape index: {}]
  %s11 = inlined_call_operand.vmem [shape: f32[64,8], index: 11, kind: input, shape index: {}]
  %s12 = inlined_call_operand.vmem [shape: f32[64,1], index: 12, kind: input, shape index: {}]
  %s13 = inlined_call_operand.vmem [shape: f32[32,128], index: 13, kind: output, shape index: {}]
  %s14 = sld [smem:[#allocation0]]
  $region62: #{residual_block_forward.1} parent=0
    _
  %s16 = ssub.s32 1, %s14
  %s17 = scalar_select 0, %s16, %s14
  // Predicated region
  $region2: #{residual_block_forward.1} parent=0 // pred_check
    _
  $region3: #{residual_block_forward.1} parent=0 // pred_check_branch
    %19 = sbr.rel (0) target = $region5
  $region4: #{residual_block_forward.1} parent=0 // pred_region
    _
  $region5: #{residual_block_forward.1} parent=0 // pred_fallthru
    _
  // Predicated region
  $region6: #{residual_block_forward.1} parent=0 // pred_check
    _
  $region7: #{residual_block_forward.1} parent=0 // pred_check_branch
    %21 = sbr.rel (0) target = $region9
  $region8: #{residual_block_forward.1} parent=0 // pred_region
    _
  $region9: #{residual_block_forward.1} parent=0 // pred_fallthru
    _
  // Predicated region
  $region10: #{residual_block_forward.1} parent=0 // pred_check
    _
  $region11: #{residual_block_forward.1} parent=0 // pred_check_branch
    %23 = sbr.rel (0) target = $region13
  $region12: #{residual_block_forward.1} parent=0 // pred_region
    _
  $region13: #{residual_block_forward.1} parent=0 // pred_fallthru
    _
  // Predicated region
  $region14: #{residual_block_forward.1} parent=0 // pred_check
    _
  $region15: #{residual_block_forward.1} parent=0 // pred_check_branch
    %25 = sbr.rel (0) target = $region17
  $region16: #{residual_block_forward.1} parent=0 // pred_region
    _
  $region17: #{residual_block_forward.1} parent=0 // pred_fallthru
    _
  // Predicated region
  $region18: #{residual_block_forward.1} parent=0 // pred_check
    _
  $region19: #{residual_block_forward.1} parent=0 // pred_check_branch
    %27 = sbr.rel (0) target = $region21
  $region20: #{residual_block_forward.1} parent=0 // pred_region
    _
  $region21: #{residual_block_forward.1} parent=0 // pred_fallthru
    _
  // Predicated region
  $region22: #{residual_block_forward.1} parent=0 // pred_check
    _
  $region23: #{residual_block_forward.1} parent=0 // pred_check_branch
    %29 = sbr.rel (0) target = $region25
  $region24: #{residual_block_forward.1} parent=0 // pred_region
    _
  $region25: #{residual_block_forward.1} parent=0 // pred_fallthru
    _
  // Predicated region
  $region26: #{residual_block_forward.1} parent=0 // pred_check
    _
  $region27: #{residual_block_forward.1} parent=0 // pred_check_branch
    %31 = sbr.rel (0) target = $region29
  $region28: #{residual_block_forward.1} parent=0 // pred_region
    _
  $region29: #{residual_block_forward.1} parent=0 // pred_fallthru
    _
  // Predicated region
  $region30: #{residual_block_forward.1} parent=0 // pred_check
    _
  $region31: #{residual_block_forward.1} parent=0 // pred_check_branch
    %33 = sbr.rel (0) target = $region33
  $region32: #{residual_block_forward.1} parent=0 // pred_region
    _
  $region33: #{residual_block_forward.1} parent=0 // pred_fallthru
    _
  // Predicated region
  $region34: #{residual_block_forward.1} parent=0 // pred_check
    _
  $region35: #{residual_block_forward.1} parent=0 // pred_check_branch
    %35 = sbr.rel (0) target = $region37
  $region36: #{residual_block_forward.1} parent=0 // pred_region
    _
  $region37: #{residual_block_forward.1} parent=0 // pred_fallthru
    _
  // Predicated region
  $region38: #{residual_block_forward.1} parent=0 // pred_check
    _
  $region39: #{residual_block_forward.1} parent=0 // pred_check_branch
    %37 = sbr.rel (0) target = $region41
  $region40: #{residual_block_forward.1} parent=0 // pred_region
    _
  $region41: #{residual_block_forward.1} parent=0 // pred_fallthru
    _
  // Predicated region
  $region42: #{residual_block_forward.1} parent=0 // pred_check
    _
  $region43: #{residual_block_forward.1} parent=0 // pred_check_branch
    %39 = sbr.rel (0) target = $region45
  $region44: #{residual_block_forward.1} parent=0 // pred_region
    _
  $region45: #{residual_block_forward.1} parent=0 // pred_fallthru
    _
  // Predicated region
  $region46: #{residual_block_forward.1} parent=0 // pred_check
    _
  $region47: #{residual_block_forward.1} parent=0 // pred_check_branch
    %41 = sbr.rel (0) target = $region49
  $region48: #{residual_block_forward.1} parent=0 // pred_region
    _
  $region49: #{residual_block_forward.1} parent=0 // pred_fallthru
    _
  // Predicated region
  $region50: #{residual_block_forward.1} parent=0 // pred_check
    _
  $region51: #{residual_block_forward.1} parent=0 // pred_check_branch
    %43 = sbr.rel (0) target = $region53
  $region52: #{residual_block_forward.1} parent=0 // pred_region
    _
  $region53: #{residual_block_forward.1} parent=0 // pred_fallthru
    _
  %v45 = vld [vmem:[%s0] sm:$0xff]
  %v46 = vld [vmem:[%s0 + $0x8] sm:$0xff]
  %v47 = vld [vmem:[%s0 + $0x10] sm:$0xff]
  %v48 = vld [vmem:[%s0 + $0x18] sm:$0xff]
  %v49 = vld [vmem:[%s1] sm:$0x1]
  %54 = vrot.lane.b32.xlu0 %v45, 9
  %v55 = vpop.permute.xlu0 %54
  %56 = vrot.lane.b32.xlu0 %v46, 9
  %v57 = vpop.permute.xlu0 %56
  %58 = vrot.lane.b32.xlu0 %v47, 9
  %v59 = vpop.permute.xlu0 %58
  %60 = vrot.lane.b32.xlu0 %v48, 9
  %v61 = vpop.permute.xlu0 %60
  %vm66 = vcmask 72704
  %v67 = vsel %vm66, 0.0, %v55
  %v68 = vsel %vm66, 0.0, %v57
  %v69 = vsel %vm66, 0.0, %v59
  %v70 = vsel %vm66, 0.0, %v61
  %v71 = vld [vmem:[%s4] sm:$0x1]
  %v73 = vperm.slane %v71, 0
  %v75 = vmul.f32 %v67, %v73
  %v76 = vmul.f32 %v68, %v73
  %v77 = vmul.f32 %v69, %v73
  %v78 = vmul.f32 %v70, %v73
  %v79 = vpack.c.bf16 %v75, %v75
  %v80 = vpack.c.bf16 %v76, %v76
  %v81 = vpack.c.bf16 %v77, %v77
  %v82 = vpack.c.bf16 %v78, %v78
  %83 = vst [vmem:[#allocation2] sm:$0xf] %v79
  %84 = vst [vmem:[#allocation2 + $0x4] sm:$0xf] %v80
  %85 = vst [vmem:[#allocation2 + $0x8] sm:$0xf] %v81
  %86 = vst [vmem:[#allocation2 + $0xc] sm:$0xf] %v82
  %87 = vrot.lane.b32.xlu0 %v45, 8
  %v88 = vpop.permute.xlu0 %87
  %89 = vrot.lane.b32.xlu0 %v46, 8
  %v90 = vpop.permute.xlu0 %89
  %91 = vrot.lane.b32.xlu0 %v47, 8
  %v92 = vpop.permute.xlu0 %91
  %93 = vrot.lane.b32.xlu0 %v48, 8
  %v94 = vpop.permute.xlu0 %93
  %vm99 = vcmask 64512
  %v100 = vsel %vm99, 0.0, %v88
  %v101 = vsel %vm99, 0.0, %v90
  %v102 = vsel %vm99, 0.0, %v92
  %v103 = vsel %vm99, 0.0, %v94
  %s104 = scalar_lea.vmem %s4, 1
  %v105 = vld [vmem:[%s104] sm:$0x1]
  %v107 = vperm.slane %v105, 0
  %v109 = vmul.f32 %v100, %v107
  %v110 = vmul.f32 %v101, %v107
  %v111 = vmul.f32 %v102, %v107
  %v112 = vmul.f32 %v103, %v107
  %v113 = vpack.c.bf16 %v109, %v109
  %v114 = vpack.c.bf16 %v110, %v110
  %v115 = vpack.c.bf16 %v111, %v111
  %v116 = vpack.c.bf16 %v112, %v112
  %117 = vst [vmem:[#allocation2 + $0x10] sm:$0xf] %v113
  %118 = vst [vmem:[#allocation2 + $0x14] sm:$0xf] %v114
  %119 = vst [vmem:[#allocation2 + $0x18] sm:$0xf] %v115
  %120 = vst [vmem:[#allocation2 + $0x1c] sm:$0xf] %v116
  %121 = vrot.lane.b32.xlu0 %v45, 7
  %v122 = vpop.permute.xlu0 %121
  %123 = vrot.lane.b32.xlu0 %v46, 7
  %v124 = vpop.permute.xlu0 %123
  %125 = vrot.lane.b32.xlu0 %v47, 7
  %v126 = vpop.permute.xlu0 %125
  %127 = vrot.lane.b32.xlu0 %v48, 7
  %v128 = vpop.permute.xlu0 %127
  %vm133 = vcmask 56320
  %v134 = vsel %vm133, 0.0, %v122
  %v135 = vsel %vm133, 0.0, %v124
  %v136 = vsel %vm133, 0.0, %v126
  %v137 = vsel %vm133, 0.0, %v128
  %s138 = scalar_lea.vmem %s4, 2
  %v139 = vld [vmem:[%s138] sm:$0x1]
  %v141 = vperm.slane %v139, 0
  %v143 = vmul.f32 %v134, %v141
  %v144 = vmul.f32 %v135, %v141
  %v145 = vmul.f32 %v136, %v141
  %v146 = vmul.f32 %v137, %v141
  %v147 = vpack.c.bf16 %v143, %v143
  %v148 = vpack.c.bf16 %v144, %v144
  %v149 = vpack.c.bf16 %v145, %v145
  %v150 = vpack.c.bf16 %v146, %v146
  %151 = vst [vmem:[#allocation2 + $0x20] sm:$0xf] %v147
  %152 = vst [vmem:[#allocation2 + $0x24] sm:$0xf] %v148
  %153 = vst [vmem:[#allocation2 + $0x28] sm:$0xf] %v149
  %154 = vst [vmem:[#allocation2 + $0x2c] sm:$0xf] %v150
  %155 = vrot.lane.b32.xlu0 %v45, 1
  %v156 = vpop.permute.xlu0 %155
  %157 = vrot.lane.b32.xlu0 %v46, 1
  %v158 = vpop.permute.xlu0 %157
  %159 = vrot.lane.b32.xlu0 %v47, 1
  %v160 = vpop.permute.xlu0 %159
  %161 = vrot.lane.b32.xlu0 %v48, 1
  %v162 = vpop.permute.xlu0 %161
  %vm167 = vcmask 7168
  %v168 = vsel %vm167, 0.0, %v156
  %v169 = vsel %vm167, 0.0, %v158
  %v170 = vsel %vm167, 0.0, %v160
  %v171 = vsel %vm167, 0.0, %v162
  %s172 = scalar_lea.vmem %s4, 3
  %v173 = vld [vmem:[%s172] sm:$0x1]
  %v175 = vperm.slane %v173, 0
  %v177 = vmul.f32 %v168, %v175
  %v178 = vmul.f32 %v169, %v175
  %v179 = vmul.f32 %v170, %v175
  %v180 = vmul.f32 %v171, %v175
  %v181 = vpack.c.bf16 %v177, %v177
  %v182 = vpack.c.bf16 %v178, %v178
  %v183 = vpack.c.bf16 %v179, %v179
  %v184 = vpack.c.bf16 %v180, %v180
  %185 = vst [vmem:[#allocation2 + $0x30] sm:$0xf] %v181
  %186 = vst [vmem:[#allocation2 + $0x34] sm:$0xf] %v182
  %187 = vst [vmem:[#allocation2 + $0x38] sm:$0xf] %v183
  %188 = vst [vmem:[#allocation2 + $0x3c] sm:$0xf] %v184
  %s189 = scalar_lea.vmem %s4, 4
  %v190 = vld [vmem:[%s189] sm:$0x1]
  %v192 = vperm.slane %v190, 0
  %v194 = vmul.f32 %v45, %v192
  %v195 = vmul.f32 %v46, %v192
  %v196 = vmul.f32 %v47, %v192
  %v197 = vmul.f32 %v48, %v192
  %v198 = vpack.c.bf16 %v194, %v194
  %v199 = vpack.c.bf16 %v195, %v195
  %v200 = vpack.c.bf16 %v196, %v196
  %v201 = vpack.c.bf16 %v197, %v197
  %202 = vst [vmem:[#allocation2 + $0x40] sm:$0xf] %v198
  %203 = vst [vmem:[#allocation2 + $0x44] sm:$0xf] %v199
  %204 = vst [vmem:[#allocation2 + $0x48] sm:$0xf] %v200
  %205 = vst [vmem:[#allocation2 + $0x4c] sm:$0xf] %v201
  %206 = vrot.lane.b32.xlu0 %v45, 127
  %v207 = vpop.permute.xlu0 %206
  %208 = vrot.lane.b32.xlu0 %v46, 127
  %v209 = vpop.permute.xlu0 %208
  %210 = vrot.lane.b32.xlu0 %v47, 127
  %v211 = vpop.permute.xlu0 %210
  %212 = vrot.lane.b32.xlu0 %v48, 127
  %v213 = vpop.permute.xlu0 %212
  %vm218 = vcmask 1039360
  %v219 = vsel %vm218, %v207, 0.0
  %v220 = vsel %vm218, %v209, 0.0
  %v221 = vsel %vm218, %v211, 0.0
  %v222 = vsel %vm218, %v213, 0.0
  %s223 = scalar_lea.vmem %s4, 5
  %v224 = vld [vmem:[%s223] sm:$0x1]
  %v226 = vperm.slane %v224, 0
  %v228 = vmul.f32 %v219, %v226
  %v229 = vmul.f32 %v220, %v226
  %v230 = vmul.f32 %v221, %v226
  %v231 = vmul.f32 %v222, %v226
  %v232 = vpack.c.bf16 %v228, %v228
  %v233 = vpack.c.bf16 %v229, %v229
  %v234 = vpack.c.bf16 %v230, %v230
  %v235 = vpack.c.bf16 %v231, %v231
  %236 = vst [vmem:[#allocation2 + $0x50] sm:$0xf] %v232
  %237 = vst [vmem:[#allocation2 + $0x54] sm:$0xf] %v233
  %238 = vst [vmem:[#allocation2 + $0x58] sm:$0xf] %v234
  %239 = vst [vmem:[#allocation2 + $0x5c] sm:$0xf] %v235
  %240 = vrot.lane.b32.xlu0 %v45, 121
  %v241 = vpop.permute.xlu0 %240
  %242 = vrot.lane.b32.xlu0 %v46, 121
  %v243 = vpop.permute.xlu0 %242
  %244 = vrot.lane.b32.xlu0 %v47, 121
  %v245 = vpop.permute.xlu0 %244
  %246 = vrot.lane.b32.xlu0 %v48, 121
  %v247 = vpop.permute.xlu0 %246
  %vm252 = vcmask 990208
  %v253 = vsel %vm252, %v241, 0.0
  %v254 = vsel %vm252, %v243, 0.0
  %v255 = vsel %vm252, %v245, 0.0
  %v256 = vsel %vm252, %v247, 0.0
  %s257 = scalar_lea.vmem %s4, 6
  %v258 = vld [vmem:[%s257] sm:$0x1]
  %v260 = vperm.slane %v258, 0
  %v262 = vmul.f32 %v253, %v260
  %v263 = vmul.f32 %v254, %v260
  %v264 = vmul.f32 %v255, %v260
  %v265 = vmul.f32 %v256, %v260
  %v266 = vpack.c.bf16 %v262, %v262
  %v267 = vpack.c.bf16 %v263, %v263
  %v268 = vpack.c.bf16 %v264, %v264
  %v269 = vpack.c.bf16 %v265, %v265
  %270 = vst [vmem:[#allocation2 + $0x60] sm:$0xf] %v266
  %271 = vst [vmem:[#allocation2 + $0x64] sm:$0xf] %v267
  %272 = vst [vmem:[#allocation2 + $0x68] sm:$0xf] %v268
  %273 = vst [vmem:[#allocation2 + $0x6c] sm:$0xf] %v269
  %274 = vrot.lane.b32.xlu0 %v45, 120
  %v275 = vpop.permute.xlu0 %274
  %276 = vrot.lane.b32.xlu0 %v46, 120
  %v277 = vpop.permute.xlu0 %276
  %278 = vrot.lane.b32.xlu0 %v47, 120
  %v279 = vpop.permute.xlu0 %278
  %280 = vrot.lane.b32.xlu0 %v48, 120
  %v281 = vpop.permute.xlu0 %280
  %vm286 = vcmask 982016
  %v287 = vsel %vm286, %v275, 0.0
  %v288 = vsel %vm286, %v277, 0.0
  %v289 = vsel %vm286, %v279, 0.0
  %v290 = vsel %vm286, %v281, 0.0
  %s291 = scalar_lea.vmem %s4, 7
  %v292 = vld [vmem:[%s291] sm:$0x1]
  %v294 = vperm.slane %v292, 0
  %v296 = vmul.f32 %v287, %v294
  %v297 = vmul.f32 %v288, %v294
  %v298 = vmul.f32 %v289, %v294
  %v299 = vmul.f32 %v290, %v294
  %v300 = vpack.c.bf16 %v296, %v296
  %v301 = vpack.c.bf16 %v297, %v297
  %v302 = vpack.c.bf16 %v298, %v298
  %v303 = vpack.c.bf16 %v299, %v299
  %304 = vst [vmem:[#allocation2 + $0x70] sm:$0xf] %v300
  %305 = vst [vmem:[#allocation2 + $0x74] sm:$0xf] %v301
  %306 = vst [vmem:[#allocation2 + $0x78] sm:$0xf] %v302
  %307 = vst [vmem:[#allocation2 + $0x7c] sm:$0xf] %v303
  %308 = vrot.lane.b32.xlu0 %v45, 119
  %v309 = vpop.permute.xlu0 %308
  %310 = vrot.lane.b32.xlu0 %v46, 119
  %v311 = vpop.permute.xlu0 %310
  %312 = vrot.lane.b32.xlu0 %v47, 119
  %v313 = vpop.permute.xlu0 %312
  %314 = vrot.lane.b32.xlu0 %v48, 119
  %v315 = vpop.permute.xlu0 %314
  %vm320 = vcmask 973824
  %v321 = vsel %vm320, %v309, 0.0
  %v322 = vsel %vm320, %v311, 0.0
  %v323 = vsel %vm320, %v313, 0.0
  %v324 = vsel %vm320, %v315, 0.0
  %s325 = scalar_lea.vmem %s4, 8
  %v326 = vld [vmem:[%s325] sm:$0x1]
  %v328 = vperm.slane %v326, 0
  %v330 = vmul.f32 %v321, %v328
  %v331 = vmul.f32 %v322, %v328
  %v332 = vmul.f32 %v323, %v328
  %v333 = vmul.f32 %v324, %v328
  %v334 = vpack.c.bf16 %v330, %v330
  %v335 = vpack.c.bf16 %v331, %v331
  %v336 = vpack.c.bf16 %v332, %v332
  %v337 = vpack.c.bf16 %v333, %v333
  %338 = vst [vmem:[#allocation2 + $0x80] sm:$0xf] %v334
  %339 = vst [vmem:[#allocation2 + $0x84] sm:$0xf] %v335
  %340 = vst [vmem:[#allocation2 + $0x88] sm:$0xf] %v336
  %341 = vst [vmem:[#allocation2 + $0x8c] sm:$0xf] %v337
  %v342 = vld [vmem:[%s5] sm:$0xff]
  %v343 = vld [vmem:[%s5 + $0x8] sm:$0xf]
  %v344 = vld [vmem:[%s5 + $0xc] sm:$0xff]
  %v345 = vld [vmem:[%s5 + $0x14] sm:$0xf]
  %v346 = vld [vmem:[%s5 + $0x18] sm:$0xff]
  %v347 = vld [vmem:[%s5 + $0x20] sm:$0xf]
  %v348 = vld [vmem:[%s5 + $0x24] sm:$0xff]
  %v349 = vld [vmem:[%s5 + $0x2c] sm:$0xf]
  %v350 = vld [vmem:[#allocation2] sm:$0xf]
  %v351 = vld [vmem:[#allocation2 + $0x4] sm:$0xf]
  %v352 = vld [vmem:[#allocation2 + $0x8] sm:$0xf]
  %v353 = vld [vmem:[#allocation2 + $0xc] sm:$0xf]
  %v354 = vld [vmem:[#allocation2 + $0x10] sm:$0xf]
  %v355 = vld [vmem:[#allocation2 + $0x14] sm:$0xf]
  %v356 = vld [vmem:[#allocation2 + $0x18] sm:$0xf]
  %v357 = vld [vmem:[#allocation2 + $0x1c] sm:$0xf]
  %v358 = vld [vmem:[#allocation2 + $0x20] sm:$0xf]
  %v359 = vld [vmem:[#allocation2 + $0x24] sm:$0xf]
  %v360 = vld [vmem:[#allocation2 + $0x28] sm:$0xf]
  %v361 = vld [vmem:[#allocation2 + $0x2c] sm:$0xf]
  %v362 = vld [vmem:[#allocation2 + $0x30] sm:$0xf]
  %v363 = vld [vmem:[#allocation2 + $0x34] sm:$0xf]
  %v364 = vld [vmem:[#allocation2 + $0x38] sm:$0xf]
  %v365 = vld [vmem:[#allocation2 + $0x3c] sm:$0xf]
  %v366 = vld [vmem:[#allocation2 + $0x40] sm:$0xf]
  %v367 = vld [vmem:[#allocation2 + $0x44] sm:$0xf]
  %v368 = vld [vmem:[#allocation2 + $0x48] sm:$0xf]
  %v369 = vld [vmem:[#allocation2 + $0x4c] sm:$0xf]
  %v370 = vld [vmem:[#allocation2 + $0x50] sm:$0xf]
  %v371 = vld [vmem:[#allocation2 + $0x54] sm:$0xf]
  %v372 = vld [vmem:[#allocation2 + $0x58] sm:$0xf]
  %v373 = vld [vmem:[#allocation2 + $0x5c] sm:$0xf]
  %v374 = vld [vmem:[#allocation2 + $0x60] sm:$0xf]
  %v375 = vld [vmem:[#allocation2 + $0x64] sm:$0xf]
  %v376 = vld [vmem:[#allocation2 + $0x68] sm:$0xf]
  %v377 = vld [vmem:[#allocation2 + $0x6c] sm:$0xf]
  %v378 = vld [vmem:[#allocation2 + $0x70] sm:$0xf]
  %v379 = vld [vmem:[#allocation2 + $0x74] sm:$0xf]
  %v380 = vld [vmem:[#allocation2 + $0x78] sm:$0xf]
  %v381 = vld [vmem:[#allocation2 + $0x7c] sm:$0xf]
  %v382 = vld [vmem:[#allocation2 + $0x80] sm:$0xf]
  %v383 = vld [vmem:[#allocation2 + $0x84] sm:$0xf]
  %v384 = vld [vmem:[#allocation2 + $0x88] sm:$0xf]
  %v385 = vld [vmem:[#allocation2 + $0x8c] sm:$0xf]
  %v394 = vunpack.c.l.b16 %v342
  %v395 = vunpack.c.h.b16 %v342
  %v396 = vunpack.c.l.b16 %v343
  %v397 = vunpack.c.l.b16 %v344
  %v398 = vunpack.c.h.b16 %v344
  %v399 = vunpack.c.l.b16 %v345
  %v400 = vunpack.c.l.b16 %v346
  %v401 = vunpack.c.h.b16 %v346
  %v402 = vunpack.c.l.b16 %v347
  %v403 = vunpack.c.l.b16 %v348
  %v404 = vunpack.c.h.b16 %v348
  %v405 = vunpack.c.l.b16 %v349
  %v406 = vpack.c.b16 %v397, %v394
  %v407 = vpack.c.b16 %v398, %v395
  %v408 = vpack.c.b16 %v399, %v396
  %v409 = vpack.c.b16 %v403, %v400
  %v410 = vpack.c.b16 %v404, %v401
  %v411 = vpack.c.b16 %v405, %v402
  %v452 = vunpack.c.l.b16 %v350
  %v453 = vunpack.c.l.b16 %v351
  %v454 = vunpack.c.l.b16 %v352
  %v455 = vunpack.c.l.b16 %v353
  %v456 = vunpack.c.l.b16 %v354
  %v457 = vunpack.c.l.b16 %v355
  %v458 = vunpack.c.l.b16 %v356
  %v459 = vunpack.c.l.b16 %v357
  %v460 = vunpack.c.l.b16 %v358
  %v461 = vunpack.c.l.b16 %v359
  %v462 = vunpack.c.l.b16 %v360
  %v463 = vunpack.c.l.b16 %v361
  %v464 = vunpack.c.l.b16 %v362
  %v465 = vunpack.c.l.b16 %v363
  %v466 = vunpack.c.l.b16 %v364
  %v467 = vunpack.c.l.b16 %v365
  %v468 = vunpack.c.l.b16 %v366
  %v469 = vunpack.c.l.b16 %v367
  %v470 = vunpack.c.l.b16 %v368
  %v471 = vunpack.c.l.b16 %v369
  %v472 = vunpack.c.l.b16 %v370
  %v473 = vunpack.c.l.b16 %v371
  %v474 = vunpack.c.l.b16 %v372
  %v475 = vunpack.c.l.b16 %v373
  %v476 = vunpack.c.l.b16 %v374
  %v477 = vunpack.c.l.b16 %v375
  %v478 = vunpack.c.l.b16 %v376
  %v479 = vunpack.c.l.b16 %v377
  %v480 = vunpack.c.l.b16 %v378
  %v481 = vunpack.c.l.b16 %v379
  %v482 = vunpack.c.l.b16 %v380
  %v483 = vunpack.c.l.b16 %v381
  %v484 = vunpack.c.l.b16 %v382
  %v485 = vunpack.c.l.b16 %v383
  %v486 = vunpack.c.l.b16 %v384
  %v487 = vunpack.c.l.b16 %v385
  %v488 = vpack.c.b16 %v453, %v452
  %v489 = vpack.c.b16 %v455, %v454
  %v490 = vpack.c.b16 %v457, %v456
  %v491 = vpack.c.b16 %v459, %v458
  %v492 = vpack.c.b16 %v461, %v460
  %v493 = vpack.c.b16 %v463, %v462
  %v494 = vpack.c.b16 %v465, %v464
  %v495 = vpack.c.b16 %v467, %v466
  %v496 = vpack.c.b16 %v469, %v468
  %v497 = vpack.c.b16 %v471, %v470
  %v498 = vpack.c.b16 %v473, %v472
  %v499 = vpack.c.b16 %v475, %v474
  %v500 = vpack.c.b16 %v477, %v476
  %v501 = vpack.c.b16 %v479, %v478
  %v502 = vpack.c.b16 %v481, %v480
  %v503 = vpack.c.b16 %v483, %v482
  %v504 = vpack.c.b16 %v485, %v484
  %v505 = vpack.c.b16 %v487, %v486
  %vm524 = vcmask 261120
  %v526 = vsel %vm524, %v408, 0
  %v529 = vsel %vm524, %v411, 0
  %531 = vmatpush.bf16.msra.mxu0 %v495
  %532 = vmatpush.bf16.msra.mxu0 %v494
  %533 = vmatpush.bf16.msra.mxu0 %v493
  %534 = vmatpush.bf16.msra.mxu0 %v492
  %535 = vmatpush.bf16.msra.mxu0 %v491
  %536 = vmatpush.bf16.msra.mxu0 %v490
  %537 = vmatpush.bf16.msra.mxu0 %v489
  %538 = vmatpush.bf16.msra.mxu0 %v488
  %539 = vmatmul.bf16.gmra.mxu0 %v406
  %v540 = vpop.f32.mrf.mxu0
  %v541 = vadd.f32 0.0, %v540
  %v542 = vpop.f32.mrf.mxu0
  %v543 = vadd.f32 0.0, %v542
  %544 = vmatmul.bf16.gmra.mxu0 %v409
  %v545 = vpop.f32.mrf.mxu0
  %v546 = vadd.f32 0.0, %v545
  %v547 = vpop.f32.mrf.mxu0
  %v548 = vadd.f32 0.0, %v547
  %549 = vdwg.mxu0
  %550 = vmatpush.bf16.msra.mxu0 %v503
  %551 = vmatpush.bf16.msra.mxu0 %v502
  %552 = vmatpush.bf16.msra.mxu0 %v501
  %553 = vmatpush.bf16.msra.mxu0 %v500
  %554 = vmatpush.bf16.msra.mxu0 %v499
  %555 = vmatpush.bf16.msra.mxu0 %v498
  %556 = vmatpush.bf16.msra.mxu0 %v497
  %557 = vmatpush.bf16.msra.mxu0 %v496
  %558 = vmatmul.bf16.gmra.mxu0 %v407
  %v559 = vpop.f32.mrf.mxu0
  %v560 = vadd.f32 %v541, %v559
  %v561 = vpop.f32.mrf.mxu0
  %v562 = vadd.f32 %v543, %v561
  %563 = vmatmul.bf16.gmra.mxu0 %v410
  %v564 = vpop.f32.mrf.mxu0
  %v565 = vadd.f32 %v546, %v564
  %v566 = vpop.f32.mrf.mxu0
  %v567 = vadd.f32 %v548, %v566
  %568 = vdwg.mxu0
  %569 = vmatpush.bf16.msra.mxu0 0
  %570 = vmatpush.bf16.msra.mxu0 0
  %571 = vmatpush.bf16.msra.mxu0 0
  %572 = vmatpush.bf16.msra.mxu0 0
  %573 = vmatpush.bf16.msra.mxu0 0
  %574 = vmatpush.bf16.msra.mxu0 0
  %575 = vmatpush.bf16.msra.mxu0 %v505
  %576 = vmatpush.bf16.msra.mxu0 %v504
  %577 = vmatmul.bf16.gmra.mxu0 %v526
  %v578 = vpop.f32.mrf.mxu0
  %v579 = vadd.f32 %v560, %v578
  %v580 = vpop.f32.mrf.mxu0
  %v581 = vadd.f32 %v562, %v580
  %582 = vmatmul.bf16.gmra.mxu0 %v529
  %v583 = vpop.f32.mrf.mxu0
  %v584 = vadd.f32 %v565, %v583
  %v585 = vpop.f32.mrf.mxu0
  %v586 = vadd.f32 %v567, %v585
  %587 = vdwg.mxu0
  %v588 = vld [vmem:[%s6] sm:$0xff]
  %v589 = vld [vmem:[%s6 + $0x8] sm:$0xff]
  %v590 = vld [vmem:[%s6 + $0x10] sm:$0xff]
  %v591 = vld [vmem:[%s6 + $0x18] sm:$0xff]
  %593 = vset.pattern.permute.xlu0 0
  %594 = vperm.xlu0 %593, %v588
  %v595 = vpop.permute.xlu0 %594
  %598 = vset.pattern.permute.xlu0 0
  %599 = vperm.xlu0 %598, %v589
  %v600 = vpop.permute.xlu0 %599
  %603 = vset.pattern.permute.xlu0 0
  %604 = vperm.xlu0 %603, %v590
  %v605 = vpop.permute.xlu0 %604
  %608 = vset.pattern.permute.xlu0 0
  %609 = vperm.xlu0 %608, %v591
  %v610 = vpop.permute.xlu0 %609
  %v612 = vmul.f32 %v579, %v595
  %v613 = vmul.f32 %v581, %v600
  %v614 = vmul.f32 %v584, %v605
  %v615 = vmul.f32 %v586, %v610
  %616 = vset.pattern.permute.xlu0 1
  %617 = vperm.xlu0 %616, %v588
  %v618 = vpop.permute.xlu0 %617
  %620 = vset.pattern.permute.xlu0 1
  %621 = vperm.xlu0 %620, %v589
  %v622 = vpop.permute.xlu0 %621
  %624 = vset.pattern.permute.xlu0 1
  %625 = vperm.xlu0 %624, %v590
  %v626 = vpop.permute.xlu0 %625
  %628 = vset.pattern.permute.xlu0 1
  %629 = vperm.xlu0 %628, %v591
  %v630 = vpop.permute.xlu0 %629
  %v632 = vadd.f32 %v612, %v618
  %v633 = vadd.f32 %v613, %v622
  %v634 = vadd.f32 %v614, %v626
  %v635 = vadd.f32 %v615, %v630
  %v637 = vperm.slane %v49, 0
  %v639 = vmul.f32 %v632, %v637
  %v640 = vmul.f32 %v633, %v637
  %v641 = vmul.f32 %v634, %v637
  %v642 = vmul.f32 %v635, %v637
  %v643 = vmax.f32 %v639, 0.0
  %v644 = vmax.f32 %v640, 0.0
  %v645 = vmax.f32 %v641, 0.0
  %v646 = vmax.f32 %v642, 0.0
  %651 = vrot.lane.b32.xlu0 %v643, 9
  %v652 = vpop.permute.xlu0 %651
  %653 = vrot.lane.b32.xlu0 %v644, 9
  %v654 = vpop.permute.xlu0 %653
  %655 = vrot.lane.b32.xlu0 %v645, 9
  %v656 = vpop.permute.xlu0 %655
  %657 = vrot.lane.b32.xlu0 %v646, 9
  %v658 = vpop.permute.xlu0 %657
  %v663 = vsel %vm66, 0.0, %v652
  %v664 = vsel %vm66, 0.0, %v654
  %v665 = vsel %vm66, 0.0, %v656
  %v666 = vsel %vm66, 0.0, %v658
  %v667 = vld [vmem:[%s4] sm:$0x1]
  %v669 = vperm.slane %v667, 0
  %v671 = vmul.f32 %v663, %v669
  %v672 = vmul.f32 %v664, %v669
  %v673 = vmul.f32 %v665, %v669
  %v674 = vmul.f32 %v666, %v669
  %v675 = vpack.c.bf16 %v671, %v671
  %v676 = vpack.c.bf16 %v672, %v672
  %v677 = vpack.c.bf16 %v673, %v673
  %v678 = vpack.c.bf16 %v674, %v674
  %679 = vst [vmem:[#allocation2] sm:$0xf] %v675
  %680 = vst [vmem:[#allocation2 + $0x4] sm:$0xf] %v676
  %681 = vst [vmem:[#allocation2 + $0x8] sm:$0xf] %v677
  %682 = vst [vmem:[#allocation2 + $0xc] sm:$0xf] %v678
  %683 = vrot.lane.b32.xlu0 %v643, 8
  %v684 = vpop.permute.xlu0 %683
  %685 = vrot.lane.b32.xlu0 %v644, 8
  %v686 = vpop.permute.xlu0 %685
  %687 = vrot.lane.b32.xlu0 %v645, 8
  %v688 = vpop.permute.xlu0 %687
  %689 = vrot.lane.b32.xlu0 %v646, 8
  %v690 = vpop.permute.xlu0 %689
  %v695 = vsel %vm99, 0.0, %v684
  %v696 = vsel %vm99, 0.0, %v686
  %v697 = vsel %vm99, 0.0, %v688
  %v698 = vsel %vm99, 0.0, %v690
  %v699 = vld [vmem:[%s104] sm:$0x1]
  %v701 = vperm.slane %v699, 0
  %v703 = vmul.f32 %v695, %v701
  %v704 = vmul.f32 %v696, %v701
  %v705 = vmul.f32 %v697, %v701
  %v706 = vmul.f32 %v698, %v701
  %v707 = vpack.c.bf16 %v703, %v703
  %v708 = vpack.c.bf16 %v704, %v704
  %v709 = vpack.c.bf16 %v705, %v705
  %v710 = vpack.c.bf16 %v706, %v706
  %711 = vst [vmem:[#allocation2 + $0x10] sm:$0xf] %v707
  %712 = vst [vmem:[#allocation2 + $0x14] sm:$0xf] %v708
  %713 = vst [vmem:[#allocation2 + $0x18] sm:$0xf] %v709
  %714 = vst [vmem:[#allocation2 + $0x1c] sm:$0xf] %v710
  %715 = vrot.lane.b32.xlu0 %v643, 7
  %v716 = vpop.permute.xlu0 %715
  %717 = vrot.lane.b32.xlu0 %v644, 7
  %v718 = vpop.permute.xlu0 %717
  %719 = vrot.lane.b32.xlu0 %v645, 7
  %v720 = vpop.permute.xlu0 %719
  %721 = vrot.lane.b32.xlu0 %v646, 7
  %v722 = vpop.permute.xlu0 %721
  %v727 = vsel %vm133, 0.0, %v716
  %v728 = vsel %vm133, 0.0, %v718
  %v729 = vsel %vm133, 0.0, %v720
  %v730 = vsel %vm133, 0.0, %v722
  %v731 = vld [vmem:[%s138] sm:$0x1]
  %v733 = vperm.slane %v731, 0
  %v735 = vmul.f32 %v727, %v733
  %v736 = vmul.f32 %v728, %v733
  %v737 = vmul.f32 %v729, %v733
  %v738 = vmul.f32 %v730, %v733
  %v739 = vpack.c.bf16 %v735, %v735
  %v740 = vpack.c.bf16 %v736, %v736
  %v741 = vpack.c.bf16 %v737, %v737
  %v742 = vpack.c.bf16 %v738, %v738
  %743 = vst [vmem:[#allocation2 + $0x20] sm:$0xf] %v739
  %744 = vst [vmem:[#allocation2 + $0x24] sm:$0xf] %v740
  %745 = vst [vmem:[#allocation2 + $0x28] sm:$0xf] %v741
  %746 = vst [vmem:[#allocation2 + $0x2c] sm:$0xf] %v742
  %747 = vrot.lane.b32.xlu0 %v643, 1
  %v748 = vpop.permute.xlu0 %747
  %749 = vrot.lane.b32.xlu0 %v644, 1
  %v750 = vpop.permute.xlu0 %749
  %751 = vrot.lane.b32.xlu0 %v645, 1
  %v752 = vpop.permute.xlu0 %751
  %753 = vrot.lane.b32.xlu0 %v646, 1
  %v754 = vpop.permute.xlu0 %753
  %v759 = vsel %vm167, 0.0, %v748
  %v760 = vsel %vm167, 0.0, %v750
  %v761 = vsel %vm167, 0.0, %v752
  %v762 = vsel %vm167, 0.0, %v754
  %v763 = vld [vmem:[%s172] sm:$0x1]
  %v765 = vperm.slane %v763, 0
  %v767 = vmul.f32 %v759, %v765
  %v768 = vmul.f32 %v760, %v765
  %v769 = vmul.f32 %v761, %v765
  %v770 = vmul.f32 %v762, %v765
  %v771 = vpack.c.bf16 %v767, %v767
  %v772 = vpack.c.bf16 %v768, %v768
  %v773 = vpack.c.bf16 %v769, %v769
  %v774 = vpack.c.bf16 %v770, %v770
  %775 = vst [vmem:[#allocation2 + $0x30] sm:$0xf] %v771
  %776 = vst [vmem:[#allocation2 + $0x34] sm:$0xf] %v772
  %777 = vst [vmem:[#allocation2 + $0x38] sm:$0xf] %v773
  %778 = vst [vmem:[#allocation2 + $0x3c] sm:$0xf] %v774
  %v779 = vld [vmem:[%s189] sm:$0x1]
  %v781 = vperm.slane %v779, 0
  %v783 = vmul.f32 %v643, %v781
  %v784 = vmul.f32 %v644, %v781
  %v785 = vmul.f32 %v645, %v781
  %v786 = vmul.f32 %v646, %v781
  %v787 = vpack.c.bf16 %v783, %v783
  %v788 = vpack.c.bf16 %v784, %v784
  %v789 = vpack.c.bf16 %v785, %v785
  %v790 = vpack.c.bf16 %v786, %v786
  %791 = vst [vmem:[#allocation2 + $0x40] sm:$0xf] %v787
  %792 = vst [vmem:[#allocation2 + $0x44] sm:$0xf] %v788
  %793 = vst [vmem:[#allocation2 + $0x48] sm:$0xf] %v789
  %794 = vst [vmem:[#allocation2 + $0x4c] sm:$0xf] %v790
  %795 = vrot.lane.b32.xlu0 %v643, 127
  %v796 = vpop.permute.xlu0 %795
  %797 = vrot.lane.b32.xlu0 %v644, 127
  %v798 = vpop.permute.xlu0 %797
  %799 = vrot.lane.b32.xlu0 %v645, 127
  %v800 = vpop.permute.xlu0 %799
  %801 = vrot.lane.b32.xlu0 %v646, 127
  %v802 = vpop.permute.xlu0 %801
  %v807 = vsel %vm218, %v796, 0.0
  %v808 = vsel %vm218, %v798, 0.0
  %v809 = vsel %vm218, %v800, 0.0
  %v810 = vsel %vm218, %v802, 0.0
  %v811 = vld [vmem:[%s223] sm:$0x1]
  %v813 = vperm.slane %v811, 0
  %v815 = vmul.f32 %v807, %v813
  %v816 = vmul.f32 %v808, %v813
  %v817 = vmul.f32 %v809, %v813
  %v818 = vmul.f32 %v810, %v813
  %v819 = vpack.c.bf16 %v815, %v815
  %v820 = vpack.c.bf16 %v816, %v816
  %v821 = vpack.c.bf16 %v817, %v817
  %v822 = vpack.c.bf16 %v818, %v818
  %823 = vst [vmem:[#allocation2 + $0x50] sm:$0xf] %v819
  %824 = vst [vmem:[#allocation2 + $0x54] sm:$0xf] %v820
  %825 = vst [vmem:[#allocation2 + $0x58] sm:$0xf] %v821
  %826 = vst [vmem:[#allocation2 + $0x5c] sm:$0xf] %v822
  %827 = vrot.lane.b32.xlu0 %v643, 121
  %v828 = vpop.permute.xlu0 %827
  %829 = vrot.lane.b32.xlu0 %v644, 121
  %v830 = vpop.permute.xlu0 %829
  %831 = vrot.lane.b32.xlu0 %v645, 121
  %v832 = vpop.permute.xlu0 %831
  %833 = vrot.lane.b32.xlu0 %v646, 121
  %v834 = vpop.permute.xlu0 %833
  %v839 = vsel %vm252, %v828, 0.0
  %v840 = vsel %vm252, %v830, 0.0
  %v841 = vsel %vm252, %v832, 0.0
  %v842 = vsel %vm252, %v834, 0.0
  %v843 = vld [vmem:[%s257] sm:$0x1]
  %v845 = vperm.slane %v843, 0
  %v847 = vmul.f32 %v839, %v845
  %v848 = vmul.f32 %v840, %v845
  %v849 = vmul.f32 %v841, %v845
  %v850 = vmul.f32 %v842, %v845
  %v851 = vpack.c.bf16 %v847, %v847
  %v852 = vpack.c.bf16 %v848, %v848
  %v853 = vpack.c.bf16 %v849, %v849
  %v854 = vpack.c.bf16 %v850, %v850
  %855 = vst [vmem:[#allocation2 + $0x60] sm:$0xf] %v851
  %856 = vst [vmem:[#allocation2 + $0x64] sm:$0xf] %v852
  %857 = vst [vmem:[#allocation2 + $0x68] sm:$0xf] %v853
  %858 = vst [vmem:[#allocation2 + $0x6c] sm:$0xf] %v854
  %859 = vrot.lane.b32.xlu0 %v643, 120
  %v860 = vpop.permute.xlu0 %859
  %861 = vrot.lane.b32.xlu0 %v644, 120
  %v862 = vpop.permute.xlu0 %861
  %863 = vrot.lane.b32.xlu0 %v645, 120
  %v864 = vpop.permute.xlu0 %863
  %865 = vrot.lane.b32.xlu0 %v646, 120
  %v866 = vpop.permute.xlu0 %865
  %v871 = vsel %vm286, %v860, 0.0
  %v872 = vsel %vm286, %v862, 0.0
  %v873 = vsel %vm286, %v864, 0.0
  %v874 = vsel %vm286, %v866, 0.0
  %v875 = vld [vmem:[%s291] sm:$0x1]
  %v877 = vperm.slane %v875, 0
  %v879 = vmul.f32 %v871, %v877
  %v880 = vmul.f32 %v872, %v877
  %v881 = vmul.f32 %v873, %v877
  %v882 = vmul.f32 %v874, %v877
  %v883 = vpack.c.bf16 %v879, %v879
  %v884 = vpack.c.bf16 %v880, %v880
  %v885 = vpack.c.bf16 %v881, %v881
  %v886 = vpack.c.bf16 %v882, %v882
  %887 = vst [vmem:[#allocation2 + $0x70] sm:$0xf] %v883
  %888 = vst [vmem:[#allocation2 + $0x74] sm:$0xf] %v884
  %889 = vst [vmem:[#allocation2 + $0x78] sm:$0xf] %v885
  %890 = vst [vmem:[#allocation2 + $0x7c] sm:$0xf] %v886
  %891 = vrot.lane.b32.xlu0 %v643, 119
  %v892 = vpop.permute.xlu0 %891
  %893 = vrot.lane.b32.xlu0 %v644, 119
  %v894 = vpop.permute.xlu0 %893
  %895 = vrot.lane.b32.xlu0 %v645, 119
  %v896 = vpop.permute.xlu0 %895
  %897 = vrot.lane.b32.xlu0 %v646, 119
  %v898 = vpop.permute.xlu0 %897
  %v903 = vsel %vm320, %v892, 0.0
  %v904 = vsel %vm320, %v894, 0.0
  %v905 = vsel %vm320, %v896, 0.0
  %v906 = vsel %vm320, %v898, 0.0
  %v907 = vld [vmem:[%s325] sm:$0x1]
  %v909 = vperm.slane %v907, 0
  %v911 = vmul.f32 %v903, %v909
  %v912 = vmul.f32 %v904, %v909
  %v913 = vmul.f32 %v905, %v909
  %v914 = vmul.f32 %v906, %v909
  %v915 = vpack.c.bf16 %v911, %v911
  %v916 = vpack.c.bf16 %v912, %v912
  %v917 = vpack.c.bf16 %v913, %v913
  %v918 = vpack.c.bf16 %v914, %v914
  %919 = vst [vmem:[#allocation2 + $0x80] sm:$0xf] %v915
  %920 = vst [vmem:[#allocation2 + $0x84] sm:$0xf] %v916
  %921 = vst [vmem:[#allocation2 + $0x88] sm:$0xf] %v917
  %922 = vst [vmem:[#allocation2 + $0x8c] sm:$0xf] %v918
  %v923 = vld [vmem:[%s7] sm:$0xff]
  %v924 = vld [vmem:[%s7 + $0x8] sm:$0xf]
  %v925 = vld [vmem:[%s7 + $0xc] sm:$0xff]
  %v926 = vld [vmem:[%s7 + $0x14] sm:$0xf]
  %v927 = vld [vmem:[%s7 + $0x18] sm:$0xff]
  %v928 = vld [vmem:[%s7 + $0x20] sm:$0xf]
  %v929 = vld [vmem:[%s7 + $0x24] sm:$0xff]
  %v930 = vld [vmem:[%s7 + $0x2c] sm:$0xf]
  %v931 = vld [vmem:[#allocation2] sm:$0xf]
  %v932 = vld [vmem:[#allocation2 + $0x4] sm:$0xf]
  %v933 = vld [vmem:[#allocation2 + $0x8] sm:$0xf]
  %v934 = vld [vmem:[#allocation2 + $0xc] sm:$0xf]
  %v935 = vld [vmem:[#allocation2 + $0x10] sm:$0xf]
  %v936 = vld [vmem:[#allocation2 + $0x14] sm:$0xf]
  %v937 = vld [vmem:[#allocation2 + $0x18] sm:$0xf]
  %v938 = vld [vmem:[#allocation2 + $0x1c] sm:$0xf]
  %v939 = vld [vmem:[#allocation2 + $0x20] sm:$0xf]
  %v940 = vld [vmem:[#allocation2 + $0x24] sm:$0xf]
  %v941 = vld [vmem:[#allocation2 + $0x28] sm:$0xf]
  %v942 = vld [vmem:[#allocation2 + $0x2c] sm:$0xf]
  %v943 = vld [vmem:[#allocation2 + $0x30] sm:$0xf]
  %v944 = vld [vmem:[#allocation2 + $0x34] sm:$0xf]
  %v945 = vld [vmem:[#allocation2 + $0x38] sm:$0xf]
  %v946 = vld [vmem:[#allocation2 + $0x3c] sm:$0xf]
  %v947 = vld [vmem:[#allocation2 + $0x40] sm:$0xf]
  %v948 = vld [vmem:[#allocation2 + $0x44] sm:$0xf]
  %v949 = vld [vmem:[#allocation2 + $0x48] sm:$0xf]
  %v950 = vld [vmem:[#allocation2 + $0x4c] sm:$0xf]
  %v951 = vld [vmem:[#allocation2 + $0x50] sm:$0xf]
  %v952 = vld [vmem:[#allocation2 + $0x54] sm:$0xf]
  %v953 = vld [vmem:[#allocation2 + $0x58] sm:$0xf]
  %v954 = vld [vmem:[#allocation2 + $0x5c] sm:$0xf]
  %v955 = vld [vmem:[#allocation2 + $0x60] sm:$0xf]
  %v956 = vld [vmem:[#allocation2 + $0x64] sm:$0xf]
  %v957 = vld [vmem:[#allocation2 + $0x68] sm:$0xf]
  %v958 = vld [vmem:[#allocation2 + $0x6c] sm:$0xf]
  %v959 = vld [vmem:[#allocation2 + $0x70] sm:$0xf]
  %v960 = vld [vmem:[#allocation2 + $0x74] sm:$0xf]
  %v961 = vld [vmem:[#allocation2 + $0x78] sm:$0xf]
  %v962 = vld [vmem:[#allocation2 + $0x7c] sm:$0xf]
  %v963 = vld [vmem:[#allocation2 + $0x80] sm:$0xf]
  %v964 = vld [vmem:[#allocation2 + $0x84] sm:$0xf]
  %v965 = vld [vmem:[#allocation2 + $0x88] sm:$0xf]
  %v966 = vld [vmem:[#allocation2 + $0x8c] sm:$0xf]
  %v975 = vunpack.c.l.b16 %v923
  %v976 = vunpack.c.h.b16 %v923
  %v977 = vunpack.c.l.b16 %v924
  %v978 = vunpack.c.l.b16 %v925
  %v979 = vunpack.c.h.b16 %v925
  %v980 = vunpack.c.l.b16 %v926
  %v981 = vunpack.c.l.b16 %v927
  %v982 = vunpack.c.h.b16 %v927
  %v983 = vunpack.c.l.b16 %v928
  %v984 = vunpack.c.l.b16 %v929
  %v985 = vunpack.c.h.b16 %v929
  %v986 = vunpack.c.l.b16 %v930
  %v987 = vpack.c.b16 %v978, %v975
  %v988 = vpack.c.b16 %v979, %v976
  %v989 = vpack.c.b16 %v980, %v977
  %v990 = vpack.c.b16 %v984, %v981
  %v991 = vpack.c.b16 %v985, %v982
  %v992 = vpack.c.b16 %v986, %v983
  %v1033 = vunpack.c.l.b16 %v931
  %v1034 = vunpack.c.l.b16 %v932
  %v1035 = vunpack.c.l.b16 %v933
  %v1036 = vunpack.c.l.b16 %v934
  %v1037 = vunpack.c.l.b16 %v935
  %v1038 = vunpack.c.l.b16 %v936
  %v1039 = vunpack.c.l.b16 %v937
  %v1040 = vunpack.c.l.b16 %v938
  %v1041 = vunpack.c.l.b16 %v939
  %v1042 = vunpack.c.l.b16 %v940
  %v1043 = vunpack.c.l.b16 %v941
  %v1044 = vunpack.c.l.b16 %v942
  %v1045 = vunpack.c.l.b16 %v943
  %v1046 = vunpack.c.l.b16 %v944
  %v1047 = vunpack.c.l.b16 %v945
  %v1048 = vunpack.c.l.b16 %v946
  %v1049 = vunpack.c.l.b16 %v947
  %v1050 = vunpack.c.l.b16 %v948
  %v1051 = vunpack.c.l.b16 %v949
  %v1052 = vunpack.c.l.b16 %v950
  %v1053 = vunpack.c.l.b16 %v951
  %v1054 = vunpack.c.l.b16 %v952
  %v1055 = vunpack.c.l.b16 %v953
  %v1056 = vunpack.c.l.b16 %v954
  %v1057 = vunpack.c.l.b16 %v955
  %v1058 = vunpack.c.l.b16 %v956
  %v1059 = vunpack.c.l.b16 %v957
  %v1060 = vunpack.c.l.b16 %v958
  %v1061 = vunpack.c.l.b16 %v959
  %v1062 = vunpack.c.l.b16 %v960
  %v1063 = vunpack.c.l.b16 %v961
  %v1064 = vunpack.c.l.b16 %v962
  %v1065 = vunpack.c.l.b16 %v963
  %v1066 = vunpack.c.l.b16 %v964
  %v1067 = vunpack.c.l.b16 %v965
  %v1068 = vunpack.c.l.b16 %v966
  %v1069 = vpack.c.b16 %v1034, %v1033
  %v1070 = vpack.c.b16 %v1036, %v1035
  %v1071 = vpack.c.b16 %v1038, %v1037
  %v1072 = vpack.c.b16 %v1040, %v1039
  %v1073 = vpack.c.b16 %v1042, %v1041
  %v1074 = vpack.c.b16 %v1044, %v1043
  %v1075 = vpack.c.b16 %v1046, %v1045
  %v1076 = vpack.c.b16 %v1048, %v1047
  %v1077 = vpack.c.b16 %v1050, %v1049
  %v1078 = vpack.c.b16 %v1052, %v1051
  %v1079 = vpack.c.b16 %v1054, %v1053
  %v1080 = vpack.c.b16 %v1056, %v1055
  %v1081 = vpack.c.b16 %v1058, %v1057
  %v1082 = vpack.c.b16 %v1060, %v1059
  %v1083 = vpack.c.b16 %v1062, %v1061
  %v1084 = vpack.c.b16 %v1064, %v1063
  %v1085 = vpack.c.b16 %v1066, %v1065
  %v1086 = vpack.c.b16 %v1068, %v1067
  %v1106 = vsel %vm524, %v989, 0
  %v1109 = vsel %vm524, %v992, 0
  %1111 = vmatpush.bf16.msra.mxu0 %v1076
  %1112 = vmatpush.bf16.msra.mxu0 %v1075
  %1113 = vmatpush.bf16.msra.mxu0 %v1074
  %1114 = vmatpush.bf16.msra.mxu0 %v1073
  %1115 = vmatpush.bf16.msra.mxu0 %v1072
  %1116 = vmatpush.bf16.msra.mxu0 %v1071
  %1117 = vmatpush.bf16.msra.mxu0 %v1070
  %1118 = vmatpush.bf16.msra.mxu0 %v1069
  %1119 = vmatmul.bf16.gmra.mxu0 %v987
  %v1120 = vpop.f32.mrf.mxu0
  %v1121 = vadd.f32 0.0, %v1120
  %v1122 = vpop.f32.mrf.mxu0
  %v1123 = vadd.f32 0.0, %v1122
  %1124 = vmatmul.bf16.gmra.mxu0 %v990
  %v1125 = vpop.f32.mrf.mxu0
  %v1126 = vadd.f32 0.0, %v1125
  %v1127 = vpop.f32.mrf.mxu0
  %v1128 = vadd.f32 0.0, %v1127
  %1129 = vdwg.mxu0
  %1130 = vmatpush.bf16.msra.mxu0 %v1084
  %1131 = vmatpush.bf16.msra.mxu0 %v1083
  %1132 = vmatpush.bf16.msra.mxu0 %v1082
  %1133 = vmatpush.bf16.msra.mxu0 %v1081
  %1134 = vmatpush.bf16.msra.mxu0 %v1080
  %1135 = vmatpush.bf16.msra.mxu0 %v1079
  %1136 = vmatpush.bf16.msra.mxu0 %v1078
  %1137 = vmatpush.bf16.msra.mxu0 %v1077
  %1138 = vmatmul.bf16.gmra.mxu0 %v988
  %v1139 = vpop.f32.mrf.mxu0
  %v1140 = vadd.f32 %v1121, %v1139
  %v1141 = vpop.f32.mrf.mxu0
  %v1142 = vadd.f32 %v1123, %v1141
  %1143 = vmatmul.bf16.gmra.mxu0 %v991
  %v1144 = vpop.f32.mrf.mxu0
  %v1145 = vadd.f32 %v1126, %v1144
  %v1146 = vpop.f32.mrf.mxu0
  %v1147 = vadd.f32 %v1128, %v1146
  %1148 = vdwg.mxu0
  %1149 = vmatpush.bf16.msra.mxu0 0
  %1150 = vmatpush.bf16.msra.mxu0 0
  %1151 = vmatpush.bf16.msra.mxu0 0
  %1152 = vmatpush.bf16.msra.mxu0 0
  %1153 = vmatpush.bf16.msra.mxu0 0
  %1154 = vmatpush.bf16.msra.mxu0 0
  %1155 = vmatpush.bf16.msra.mxu0 %v1086
  %1156 = vmatpush.bf16.msra.mxu0 %v1085
  %1157 = vmatmul.bf16.gmra.mxu0 %v1106
  %v1158 = vpop.f32.mrf.mxu0
  %v1159 = vadd.f32 %v1140, %v1158
  %v1160 = vpop.f32.mrf.mxu0
  %v1161 = vadd.f32 %v1142, %v1160
  %1162 = vmatmul.bf16.gmra.mxu0 %v1109
  %v1163 = vpop.f32.mrf.mxu0
  %v1164 = vadd.f32 %v1145, %v1163
  %v1165 = vpop.f32.mrf.mxu0
  %v1166 = vadd.f32 %v1147, %v1165
  %1167 = vdwg.mxu0
  %v1168 = vld [vmem:[%s8] sm:$0xff]
  %v1169 = vld [vmem:[%s8 + $0x8] sm:$0xff]
  %v1170 = vld [vmem:[%s8 + $0x10] sm:$0xff]
  %v1171 = vld [vmem:[%s8 + $0x18] sm:$0xff]
  %1173 = vset.pattern.permute.xlu0 0
  %1174 = vperm.xlu0 %1173, %v1168
  %v1175 = vpop.permute.xlu0 %1174
  %1178 = vset.pattern.permute.xlu0 0
  %1179 = vperm.xlu0 %1178, %v1169
  %v1180 = vpop.permute.xlu0 %1179
  %1183 = vset.pattern.permute.xlu0 0
  %1184 = vperm.xlu0 %1183, %v1170
  %v1185 = vpop.permute.xlu0 %1184
  %1188 = vset.pattern.permute.xlu0 0
  %1189 = vperm.xlu0 %1188, %v1171
  %v1190 = vpop.permute.xlu0 %1189
  %v1192 = vmul.f32 %v1159, %v1175
  %v1193 = vmul.f32 %v1161, %v1180
  %v1194 = vmul.f32 %v1164, %v1185
  %v1195 = vmul.f32 %v1166, %v1190
  %1196 = vset.pattern.permute.xlu0 1
  %1197 = vperm.xlu0 %1196, %v1168
  %v1198 = vpop.permute.xlu0 %1197
  %1200 = vset.pattern.permute.xlu0 1
  %1201 = vperm.xlu0 %1200, %v1169
  %v1202 = vpop.permute.xlu0 %1201
  %1204 = vset.pattern.permute.xlu0 1
  %1205 = vperm.xlu0 %1204, %v1170
  %v1206 = vpop.permute.xlu0 %1205
  %1208 = vset.pattern.permute.xlu0 1
  %1209 = vperm.xlu0 %1208, %v1171
  %v1210 = vpop.permute.xlu0 %1209
  %v1212 = vadd.f32 %v1192, %v1198
  %v1213 = vadd.f32 %v1193, %v1202
  %v1214 = vadd.f32 %v1194, %v1206
  %v1215 = vadd.f32 %v1195, %v1210
  %v1216 = vmul.f32 %v1212, %v637
  %v1217 = vmul.f32 %v1213, %v637
  %v1218 = vmul.f32 %v1214, %v637
  %v1219 = vmul.f32 %v1215, %v637
  %v1220 = vld [vmem:[%s2] sm:$0xff]
  %v1221 = vld [vmem:[%s2 + $0x8] sm:$0xff]
  %v1222 = vld [vmem:[%s2 + $0x10] sm:$0xff]
  %v1223 = vld [vmem:[%s2 + $0x18] sm:$0xff]
  %v1224 = vld [vmem:[%s2 + $0x20] sm:$0xff]
  %v1225 = vld [vmem:[%s2 + $0x28] sm:$0xff]
  %v1226 = vld [vmem:[%s2 + $0x30] sm:$0xff]
  %v1227 = vld [vmem:[%s2 + $0x38] sm:$0xff]
  %v1228 = vld [vmem:[%s2 + $0x40] sm:$0xff]
  %v1229 = vld [vmem:[%s2 + $0x48] sm:$0xff]
  %v1230 = vld [vmem:[%s2 + $0x50] sm:$0xff]
  %v1231 = vld [vmem:[%s2 + $0x58] sm:$0xff]
  %v1232 = vld [vmem:[%s2 + $0x60] sm:$0xff]
  %v1233 = vld [vmem:[%s2 + $0x68] sm:$0xff]
  %v1234 = vld [vmem:[%s2 + $0x70] sm:$0xff]
  %v1235 = vld [vmem:[%s2 + $0x78] sm:$0xff]
  %1236 = vmatpush.msra.mxu0 %v1235
  %1237 = vmatpush.msra.mxu0 %v1234
  %1238 = vmatpush.msra.mxu0 %v1233
  %1239 = vmatpush.msra.mxu0 %v1232
  %1240 = vmatpush.msra.mxu0 %v1231
  %1241 = vmatpush.msra.mxu0 %v1230
  %1242 = vmatpush.msra.mxu0 %v1229
  %1243 = vmatpush.msra.mxu0 %v1228
  %1244 = vmatpush.msra.mxu0 %v1227
  %1245 = vmatpush.msra.mxu0 %v1226
  %1246 = vmatpush.msra.mxu0 %v1225
  %1247 = vmatpush.msra.mxu0 %v1224
  %1248 = vmatpush.msra.mxu0 %v1223
  %1249 = vmatpush.msra.mxu0 %v1222
  %1250 = vmatpush.msra.mxu0 %v1221
  %1251 = vmatpush.msra.mxu0 %v1220
  %1252 = vmatmul.f32.gmra.mxu0 %v1216
  %v1253 = vpop.f32.mrf.mxu0
  %v1254 = vadd.f32 0.0, %v1253
  %1255 = vmatmul.f32.gmra.mxu0 %v1217
  %v1256 = vpop.f32.mrf.mxu0
  %v1257 = vadd.f32 0.0, %v1256
  %1258 = vmatmul.f32.gmra.mxu0 %v1218
  %v1259 = vpop.f32.mrf.mxu0
  %v1260 = vadd.f32 0.0, %v1259
  %1261 = vmatmul.f32.gmra.mxu0 %v1219
  %v1262 = vpop.f32.mrf.mxu0
  %v1263 = vadd.f32 0.0, %v1262
  %1264 = vdwg.mxu0
  %v1265 = vsub.f32 1.0, %v49
  %v1266 = vmul.f32 %v1265, -5000.0
  %v1268 = vperm.slane %v1266, 0
  %v1270 = vadd.f32 %v1216, %v1268
  %v1271 = vadd.f32 %v1217, %v1268
  %v1272 = vadd.f32 %v1218, %v1268
  %v1273 = vadd.f32 %v1219, %v1268
  %vm1274 = vcmask 523264
  %v1275 = vsel %vm1274, %v1270, -inf
  %1276 = vmax.xlane.f32.xlu0 %v1275
  %v1277 = vpop.xlane.xlu0 %1276
  %v1278 = vsel %vm1274, %v1271, -inf
  %1279 = vmax.xlane.f32.xlu0 %v1278
  %v1280 = vpop.xlane.xlu0 %1279
  %v1281 = vsel %vm1274, %v1272, -inf
  %1282 = vmax.xlane.f32.xlu0 %v1281
  %v1283 = vpop.xlane.xlu0 %1282
  %v1284 = vsel %vm1274, %v1273, -inf
  %1285 = vmax.xlane.f32.xlu0 %v1284
  %v1286 = vpop.xlane.xlu0 %1285
  %vm1287 = vcmask 1048064
  %v1288 = vsel %vm1287, %v1270, -inf
  %1289 = vmax.xlane.f32.xlu0 %v1288
  %v1290 = vpop.xlane.xlu0 %1289
  %v1291 = vsel %vm1287, %v1271, -inf
  %1292 = vmax.xlane.f32.xlu0 %v1291
  %v1293 = vpop.xlane.xlu0 %1292
  %v1294 = vsel %vm1287, %v1272, -inf
  %1295 = vmax.xlane.f32.xlu0 %v1294
  %v1296 = vpop.xlane.xlu0 %1295
  %v1297 = vsel %vm1287, %v1273, -inf
  %1298 = vmax.xlane.f32.xlu0 %v1297
  %v1299 = vpop.xlane.xlu0 %1298
  %v1300 = vsel %vm167, %v1277, %v1290
  %v1301 = vsel %vm167, %v1280, %v1293
  %v1302 = vsel %vm167, %v1283, %v1296
  %v1303 = vsel %vm167, %v1286, %v1299
  %1308 = vrot.lane.b32.xlu0 %v1254, 126
  %v1309 = vpop.permute.xlu0 %1308
  %1310 = vrot.lane.b32.xlu0 %v1257, 126
  %v1311 = vpop.permute.xlu0 %1310
  %1312 = vrot.lane.b32.xlu0 %v1260, 126
  %v1313 = vpop.permute.xlu0 %1312
  %1314 = vrot.lane.b32.xlu0 %v1263, 126
  %v1315 = vpop.permute.xlu0 %1314
  %v1320 = vld [vmem:[%s9] sm:$0xff]
  %v1321 = vld [vmem:[%s10] sm:$0xff]
  %1323 = vset.pattern.permute.xlu0 0
  %1324 = vperm.xlu0 %1323, %v1321
  %v1325 = vpop.permute.xlu0 %1324
  %vm1327 = vcmask 785408
  %v1329 = vsel %vm1327, %v1320, 0
  %1331 = vmatpush.msra.mxu0 0.0
  %1332 = vmatpush.msra.mxu0 0.0
  %1333 = vmatpush.msra.mxu0 0.0
  %1334 = vmatpush.msra.mxu0 0.0
  %1335 = vmatpush.msra.mxu0 %v1303
  %1336 = vmatpush.msra.mxu0 %v1302
  %1337 = vmatpush.msra.mxu0 %v1301
  %1338 = vmatpush.msra.mxu0 %v1300
  %1339 = vmatpush.msra.mxu0 %v1315
  %1340 = vmatpush.msra.mxu0 %v1313
  %1341 = vmatpush.msra.mxu0 %v1311
  %1342 = vmatpush.msra.mxu0 %v1309
  %1343 = vmatpush.msra.mxu0 %v1263
  %1344 = vmatpush.msra.mxu0 %v1260
  %1345 = vmatpush.msra.mxu0 %v1257
  %1346 = vmatpush.msra.mxu0 %v1254
  %1347 = vmatmul.f32.gmra.mxu0 %v1329
  %v1348 = vpop.f32.mrf.mxu0
  %v1349 = vadd.f32 %v1325, %v1348
  %1350 = vdwg.mxu0
  %v1351 = vmax.f32 %v1349, 0.0
  %v1352 = vld [vmem:[%s11] sm:$0xff]
  %v1353 = vld [vmem:[%s11 + $0x8] sm:$0xff]
  %v1354 = vld [vmem:[%s11 + $0x10] sm:$0xff]
  %v1355 = vld [vmem:[%s11 + $0x18] sm:$0xff]
  %v1356 = vld [vmem:[%s11 + $0x20] sm:$0xff]
  %v1357 = vld [vmem:[%s11 + $0x28] sm:$0xff]
  %v1358 = vld [vmem:[%s11 + $0x30] sm:$0xff]
  %v1359 = vld [vmem:[%s11 + $0x38] sm:$0xff]
  %v1360 = vld [vmem:[%s12] sm:$0xff]
  %v1361 = vld [vmem:[%s12 + $0x8] sm:$0xff]
  %v1362 = vld [vmem:[%s12 + $0x10] sm:$0xff]
  %v1363 = vld [vmem:[%s12 + $0x18] sm:$0xff]
  %v1364 = vld [vmem:[%s12 + $0x20] sm:$0xff]
  %v1365 = vld [vmem:[%s12 + $0x28] sm:$0xff]
  %v1366 = vld [vmem:[%s12 + $0x30] sm:$0xff]
  %v1367 = vld [vmem:[%s12 + $0x38] sm:$0xff]
  %1369 = vset.pattern.permute.xlu0 0
  %1370 = vperm.xlu0 %1369, %v1360
  %v1371 = vpop.permute.xlu0 %1370
  %1374 = vset.pattern.permute.xlu0 0
  %1375 = vperm.xlu0 %1374, %v1361
  %v1376 = vpop.permute.xlu0 %1375
  %1379 = vset.pattern.permute.xlu0 0
  %1380 = vperm.xlu0 %1379, %v1362
  %v1381 = vpop.permute.xlu0 %1380
  %1384 = vset.pattern.permute.xlu0 0
  %1385 = vperm.xlu0 %1384, %v1363
  %v1386 = vpop.permute.xlu0 %1385
  %1389 = vset.pattern.permute.xlu0 0
  %1390 = vperm.xlu0 %1389, %v1364
  %v1391 = vpop.permute.xlu0 %1390
  %1394 = vset.pattern.permute.xlu0 0
  %1395 = vperm.xlu0 %1394, %v1365
  %v1396 = vpop.permute.xlu0 %1395
  %1399 = vset.pattern.permute.xlu0 0
  %1400 = vperm.xlu0 %1399, %v1366
  %v1401 = vpop.permute.xlu0 %1400
  %1404 = vset.pattern.permute.xlu0 0
  %1405 = vperm.xlu0 %1404, %v1367
  %v1406 = vpop.permute.xlu0 %1405
  %v1409 = vsel %vm99, %v1352, 0
  %v1412 = vsel %vm99, %v1353, 0
  %v1415 = vsel %vm99, %v1354, 0
  %v1418 = vsel %vm99, %v1355, 0
  %v1421 = vsel %vm99, %v1356, 0
  %v1424 = vsel %vm99, %v1357, 0
  %v1427 = vsel %vm99, %v1358, 0
  %v1430 = vsel %vm99, %v1359, 0
  %1432 = vmatpush.msra.mxu0 0.0
  %1433 = vmatpush.msra.mxu0 0.0
  %1434 = vmatpush.msra.mxu0 0.0
  %1435 = vmatpush.msra.mxu0 0.0
  %1436 = vmatpush.msra.mxu0 0.0
  %1437 = vmatpush.msra.mxu0 0.0
  %1438 = vmatpush.msra.mxu0 0.0
  %1439 = vmatpush.msra.mxu0 0.0
  %1440 = vmatpush.msra.mxu0 0.0
  %1441 = vmatpush.msra.mxu0 0.0
  %1442 = vmatpush.msra.mxu0 0.0
  %1443 = vmatpush.msra.mxu0 0.0
  %1444 = vmatpush.msra.mxu0 0.0
  %1445 = vmatpush.msra.mxu0 0.0
  %1446 = vmatpush.msra.mxu0 0.0
  %1447 = vmatpush.msra.mxu0 %v1351
  %1448 = vmatmul.f32.gmra.mxu0 %v1409
  %v1449 = vpop.f32.mrf.mxu0
  %v1450 = vadd.f32 %v1371, %v1449
  %1451 = vmatmul.f32.gmra.mxu0 %v1412
  %v1452 = vpop.f32.mrf.mxu0
  %v1453 = vadd.f32 %v1376, %v1452
  %1454 = vmatmul.f32.gmra.mxu0 %v1415
  %v1455 = vpop.f32.mrf.mxu0
  %v1456 = vadd.f32 %v1381, %v1455
  %1457 = vmatmul.f32.gmra.mxu0 %v1418
  %v1458 = vpop.f32.mrf.mxu0
  %v1459 = vadd.f32 %v1386, %v1458
  %1460 = vmatmul.f32.gmra.mxu0 %v1421
  %v1461 = vpop.f32.mrf.mxu0
  %v1462 = vadd.f32 %v1391, %v1461
  %1463 = vmatmul.f32.gmra.mxu0 %v1424
  %v1464 = vpop.f32.mrf.mxu0
  %v1465 = vadd.f32 %v1396, %v1464
  %1466 = vmatmul.f32.gmra.mxu0 %v1427
  %v1467 = vpop.f32.mrf.mxu0
  %v1468 = vadd.f32 %v1401, %v1467
  %1469 = vmatmul.f32.gmra.mxu0 %v1430
  %v1470 = vpop.f32.mrf.mxu0
  %v1471 = vadd.f32 %v1406, %v1470
  %1472 = vdwg.mxu0
  %v1473 = vsub.f32 0.0, %v1450
  %v1474 = vsub.f32 0.0, %v1453
  %v1475 = vsub.f32 0.0, %v1456
  %v1476 = vsub.f32 0.0, %v1459
  %v1477 = vmul.f32 %v1473, 1.442695
  %v1478 = vpow.pop %v1477
  %v1479 = vmul.f32 %v1474, 1.442695
  %v1480 = vpow.pop %v1479
  %v1481 = vmul.f32 %v1475, 1.442695
  %v1482 = vpow.pop %v1481
  %v1483 = vmul.f32 %v1476, 1.442695
  %v1484 = vpow.pop %v1483
  %v1485 = vadd.f32 %v1478, 1.0
  %v1486 = vadd.f32 %v1480, 1.0
  %v1487 = vadd.f32 %v1482, 1.0
  %v1488 = vadd.f32 %v1484, 1.0
  %v1489 = vrcp.pop %v1485
  %v1490 = vmul.f32 %v1485, %v1489
  %v1491 = vsub.f32 1.0, %v1490
  %v1492 = vmul.f32 %v1489, %v1491
  %v1493 = vadd.f32 %v1489, %v1492
  %vm1494 = vweird.f32 %v1485
  %vm1495 = vweird.f32 %v1489
  %vm1496 = vmor %vm1494, %vm1495
  %v1497 = vsel %vm1496, %v1489, %v1493
  %v1498 = vand.u32 2147483647, %v1485
  %vm1499 = vcmp.eq.f32.partialorder %v1498, 8.507059e+37
  %v1500 = vand.u32 %v1485, 2147483648
  %v1501 = vor.u32 1.1754944e-38, %v1500
  %v1502 = vsel %vm1499, %v1501, %v1497
  %v1503 = vmul.f32 1.0, %v1502
  %v1504 = vrcp.pop %v1486
  %v1505 = vmul.f32 %v1486, %v1504
  %v1506 = vsub.f32 1.0, %v1505
  %v1507 = vmul.f32 %v1504, %v1506
  %v1508 = vadd.f32 %v1504, %v1507
  %vm1509 = vweird.f32 %v1486
  %vm1510 = vweird.f32 %v1504
  %vm1511 = vmor %vm1509, %vm1510
  %v1512 = vsel %vm1511, %v1504, %v1508
  %v1513 = vand.u32 2147483647, %v1486
  %vm1514 = vcmp.eq.f32.partialorder %v1513, 8.507059e+37
  %v1515 = vand.u32 %v1486, 2147483648
  %v1516 = vor.u32 1.1754944e-38, %v1515
  %v1517 = vsel %vm1514, %v1516, %v1512
  %v1518 = vmul.f32 1.0, %v1517
  %v1519 = vrcp.pop %v1487
  %v1520 = vmul.f32 %v1487, %v1519
  %v1521 = vsub.f32 1.0, %v1520
  %v1522 = vmul.f32 %v1519, %v1521
  %v1523 = vadd.f32 %v1519, %v1522
  %vm1524 = vweird.f32 %v1487
  %vm1525 = vweird.f32 %v1519
  %vm1526 = vmor %vm1524, %vm1525
  %v1527 = vsel %vm1526, %v1519, %v1523
  %v1528 = vand.u32 2147483647, %v1487
  %vm1529 = vcmp.eq.f32.partialorder %v1528, 8.507059e+37
  %v1530 = vand.u32 %v1487, 2147483648
  %v1531 = vor.u32 1.1754944e-38, %v1530
  %v1532 = vsel %vm1529, %v1531, %v1527
  %v1533 = vmul.f32 1.0, %v1532
  %v1534 = vrcp.pop %v1488
  %v1535 = vmul.f32 %v1488, %v1534
  %v1536 = vsub.f32 1.0, %v1535
  %v1537 = vmul.f32 %v1534, %v1536
  %v1538 = vadd.f32 %v1534, %v1537
  %vm1539 = vweird.f32 %v1488
  %vm1540 = vweird.f32 %v1534
  %vm1541 = vmor %vm1539, %vm1540
  %v1542 = vsel %vm1541, %v1534, %v1538
  %v1543 = vand.u32 2147483647, %v1488
  %vm1544 = vcmp.eq.f32.partialorder %v1543, 8.507059e+37
  %v1545 = vand.u32 %v1488, 2147483648
  %v1546 = vor.u32 1.1754944e-38, %v1545
  %v1547 = vsel %vm1544, %v1546, %v1542
  %v1548 = vmul.f32 1.0, %v1547
  %v1549 = vld [vmem:[%s3] sm:$0x3]
  %vm1550 = vcmask 15360
  %v1552 = vsel %vm1550, %v1503, 0
  %v1555 = vsel %vm1550, %v1518, 0
  %v1558 = vsel %vm1550, %v1533, 0
  %v1561 = vsel %vm1550, %v1548, 0
  %v1564 = vsel %vm1550, %v1462, 0
  %v1567 = vsel %vm1550, %v1465, 0
  %v1570 = vsel %vm1550, %v1468, 0
  %v1573 = vsel %vm1550, %v1471, 0
  %vm1575 = vcmask 1041408
  %v1577 = vsel %vm1575, %v1549, 0
  %1579 = vmatpush.msra.mxu0 0.0
  %1580 = vmatpush.msra.mxu0 0.0
  %1581 = vmatpush.msra.mxu0 0.0
  %1582 = vmatpush.msra.mxu0 0.0
  %1583 = vmatpush.msra.mxu0 0.0
  %1584 = vmatpush.msra.mxu0 0.0
  %1585 = vmatpush.msra.mxu0 0.0
  %1586 = vmatpush.msra.mxu0 0.0
  %1587 = vmatpush.msra.mxu0 0.0
  %1588 = vmatpush.msra.mxu0 0.0
  %1589 = vmatpush.msra.mxu0 0.0
  %1590 = vmatpush.msra.mxu0 0.0
  %1591 = vmatpush.msra.mxu0 0.0
  %1592 = vmatpush.msra.mxu0 0.0
  %1593 = vmatpush.msra.mxu0 0.0
  %1594 = vmatpush.msra.mxu0 %v1577
  %1595 = vmatmul.f32.gmra.mxu0 %v1552
  %v1596 = vpop.f32.mrf.mxu0
  %v1597 = vadd.f32 0.0, %v1596
  %1598 = vmatmul.f32.gmra.mxu0 %v1555
  %v1599 = vpop.f32.mrf.mxu0
  %v1600 = vadd.f32 0.0, %v1599
  %1601 = vmatmul.f32.gmra.mxu0 %v1558
  %v1602 = vpop.f32.mrf.mxu0
  %v1603 = vadd.f32 0.0, %v1602
  %1604 = vmatmul.f32.gmra.mxu0 %v1561
  %v1605 = vpop.f32.mrf.mxu0
  %v1606 = vadd.f32 0.0, %v1605
  %1607 = vmatmul.f32.gmra.mxu0 %v1564
  %v1608 = vpop.f32.mrf.mxu0
  %v1609 = vadd.f32 0.0, %v1608
  %1610 = vmatmul.f32.gmra.mxu0 %v1567
  %v1611 = vpop.f32.mrf.mxu0
  %v1612 = vadd.f32 0.0, %v1611
  %1613 = vmatmul.f32.gmra.mxu0 %v1570
  %v1614 = vpop.f32.mrf.mxu0
  %v1615 = vadd.f32 0.0, %v1614
  %1616 = vmatmul.f32.gmra.mxu0 %v1573
  %v1617 = vpop.f32.mrf.mxu0
  %v1618 = vadd.f32 0.0, %v1617
  %1619 = vdwg.mxu0
  %v1620 = vmul.f32 %v1597, %v1216
  %v1621 = vmul.f32 %v1600, %v1217
  %v1622 = vmul.f32 %v1603, %v1218
  %v1623 = vmul.f32 %v1606, %v1219
  %v1624 = vadd.f32 %v1620, %v1609
  %v1625 = vadd.f32 %v1621, %v1612
  %v1626 = vadd.f32 %v1622, %v1615
  %v1627 = vadd.f32 %v1623, %v1618
  %v1628 = vmul.f32 %v1624, %v637
  %v1629 = vmul.f32 %v1625, %v637
  %v1630 = vmul.f32 %v1626, %v637
  %v1631 = vmul.f32 %v1627, %v637
  %v1632 = vadd.f32 %v1628, %v45
  %v1633 = vadd.f32 %v1629, %v46
  %v1634 = vadd.f32 %v1630, %v47
  %v1635 = vadd.f32 %v1631, %v48
  %v1636 = vmax.f32 %v1632, 0.0
  %v1637 = vmax.f32 %v1633, 0.0
  %v1638 = vmax.f32 %v1634, 0.0
  %v1639 = vmax.f32 %v1635, 0.0
  %1640 = vst [vmem:[%s13] sm:$0xff] %v1636
  %1641 = vst [vmem:[%s13 + $0x8] sm:$0xff] %v1637
  %1642 = vst [vmem:[%s13 + $0x10] sm:$0xff] %v1638
  %1643 = vst [vmem:[%s13 + $0x18] sm:$0xff] %v1639
  // Predicated region
  $region54: #{residual_block_forward.1} parent=0 // pred_check
    _
  $region55: #{residual_block_forward.1} parent=0 // pred_check_branch
    %1645 = sbr.rel (0) target = $region57
  $region56: #{residual_block_forward.1} parent=0 // pred_region
    _
  $region57: #{residual_block_forward.1} parent=0 // pred_fallthru
    _
  // Predicated region
  $region58: #{residual_block_forward.1} parent=0 // pred_check
    _
  $region59: #{residual_block_forward.1} parent=0 // pred_check_branch
    %1647 = sbr.rel (0) target = $region61
  $region60: #{residual_block_forward.1} parent=0 // pred_region
    _
  $region61: #{residual_block_forward.1} parent=0 // pred_fallthru
    _

</llo_original>
